<compile_context>
chip_gen: v6e
topology: v6e:2x2x1
jax: 0.10.0
libtpu: 0.0.40
codegen_flags: <defaults>
</compile_context>

<pallas_src>
import functools

import numpy as np
import jax
import jax.numpy as jnp
from jax.experimental import pallas as pl
from jax.experimental.pallas import tpu as pltpu

NUM_LAYERS = 2  # num_hidden_layers; dropout=0.0 so no dropout op is needed


# ----------------------------------------------------------------------------
# Host-side parameter packing (layout plumbing is free on the host).
# ----------------------------------------------------------------------------
def _round8(n):
    return ((n + 7) // 8) * 8


def make_layout(input_size, hidden_dim):
    """Static row layout of the packed (rows, 3H) parameter matrix."""
    entries = [
        ("l0_wih", _round8(input_size)),  # (d_in, 3H)  fused [r|z|n]
        ("l0_bi", 8),                     # (1, 3H)     b_i + folded b_hr/b_hz
        ("l0_whh", _round8(hidden_dim)),  # (H, 3H)     fused [r|z|n]
        ("l0_bh", 8),                     # (1, 3H)     [0 | 0 | b_hn]
        ("l1_wih", _round8(hidden_dim)),
        ("l1_bi", 8),
        ("l1_whh", _round8(hidden_dim)),
        ("l1_bh", 8),
        ("wfc", 8),                       # (1, H) in lanes 0:H
        ("bfc", 8),                       # scalar at [row, 0]
    ]
    layout, row = {}, 0
    for name, n in entries:
        layout[name] = row                # every slab 8-row aligned
        row += n
    return layout, row


def pack_params(p, layout, nrows, hidden_dim):
    """Transpose, gate-fuse, fold b_hr/b_hz, and pack into one (rows, 3H) f32."""
    H = hidden_dim
    G = 3 * H
    buf = np.zeros((nrows, G), np.float32)

    def put(name, val):
        val = np.asarray(val, np.float32)
        r = layout[name]
        buf[r:r + val.shape[0], :val.shape[1]] = val

    for l in range(NUM_LAYERS):
        wih = np.asarray(p[f"wih{l}"], np.float32)   # (3H, d_in), rows [r|z|n]
        whh = np.asarray(p[f"whh{l}"], np.float32)   # (3H, H)
        bih = np.asarray(p[f"bih{l}"], np.float32)   # (1, 3H)
        bhh = np.asarray(p[f"bhh{l}"], np.float32)   # (1, 3H)
        pre = f"l{l}"
        # Transposes give MXU-native (d_in, 3H) / (H, 3H) with column blocks
        # already in PyTorch gate order [W_r^T | W_z^T | W_n^T].
        put(f"{pre}_wih", wih.T)
        put(f"{pre}_whh", whh.T)
        bi = bih.copy()
        bi[:, 0:2 * H] += bhh[:, 0:2 * H]            # fold b_hr, b_hz (exact)
        put(f"{pre}_bi", bi)
        bh = np.zeros((1, G), np.float32)
        bh[:, 2 * H:3 * H] = bhh[:, 2 * H:3 * H]     # b_hn stays inside r*(...)
        put(f"{pre}_bh", bh)
    put("wfc", np.asarray(p["wfc"], np.float32))     # (1, H) -> lanes 0:H
    put("bfc", np.asarray(p["bfc"], np.float32))     # (1, 1) -> [row, 0]
    return jnp.asarray(buf)


# ----------------------------------------------------------------------------
# Kernel
# ----------------------------------------------------------------------------
def gru_kernel(x_ref, p_ref, out_ref, *, layout, input_size, hidden_dim, seq_len):
    H = hidden_dim
    T = seq_len

    def rows(name, n):                       # static, 8-aligned row slice
        r = layout[name]
        return p_ref[r:r + n, :]

    def row(name):
        r = layout[name]
        return p_ref[r:r + 1, :]             # (1, 3H)

    # Loop-invariant fused weights / biases: loaded ONCE, before the time loop.
    w0_ih = rows("l0_wih", input_size)        # (d_in, 3H)
    b0_i = row("l0_bi")                       # (1, 3H) = [b_ir+b_hr | b_iz+b_hz | b_in]
    w0_hh = rows("l0_whh", H)                 # (H, 3H)
    b0_h = row("l0_bh")                       # (1, 3H) = [0 | 0 | b_hn]
    w1_ih = rows("l1_wih", H)
    b1_i = row("l1_bi")
    w1_hh = rows("l1_whh", H)
    b1_h = row("l1_bh")

    # Layer-0 input projection for the whole sequence: one (T,d_in)@(d_in,3H)
    # matmul, kept as a vreg-resident value (off the recurrent chain).
    xg0 = jnp.dot(x_ref[...], w0_ih, preferred_element_type=jnp.float32) + b0_i

    def gru_cell(xg, h, w_hh, b_h):
        # ONE fused (1,H)@(H,3H) matmul on the recurrent chain (was 3).
        hg = jnp.dot(h, w_hh, preferred_element_type=jnp.float32) + b_h   # (1, 3H)
        r = jax.nn.sigmoid(xg[:, 0:H] + hg[:, 0:H])
        z = jax.nn.sigmoid(xg[:, H:2 * H] + hg[:, H:2 * H])
        n = jnp.tanh(xg[:, 2 * H:3 * H] + r * hg[:, 2 * H:3 * H])
        return (1.0 - z) * n + z * h

    # Wavefront interleave: the two layers' serial chains are independent
    # except that layer-1 step t consumes h0_t; everything is fully unrolled
    # (static T) so the scheduler can overlap them.
    h0 = jnp.zeros((1, H), jnp.float32)
    h1 = jnp.zeros((1, H), jnp.float32)
    h1_seq = []
    for t in range(T):
        h0 = gru_cell(xg0[t:t + 1, :], h0, w0_hh, b0_h)
        # Layer-1 input projection depends only on h0_t -> off the h1 chain.
        xg1 = jnp.dot(h0, w1_ih, preferred_element_type=jnp.float32) + b1_i
        h1 = gru_cell(xg1, h1, w1_hh, b1_h)
        h1_seq.append(h1)

    # Head: ReLU -> Linear(H, 1), on vreg-resident outputs (no VMEM round-trip).
    seq = jnp.concatenate(h1_seq, axis=0)                     # (T, H)
    act = jnp.maximum(seq, 0.0)
    wfc = row("wfc")[:, 0:H]                                  # (1, H)
    bfc = p_ref[layout["bfc"]:layout["bfc"] + 1, 0:1]         # (1, 1)
    out_ref[...] = (jnp.sum(act * wfc, axis=-1, keepdims=True)
                    + bfc).astype(out_ref.dtype)


# ----------------------------------------------------------------------------
# Wrapper
# ----------------------------------------------------------------------------
def gru_forward(x, params, hidden_dim):
    T, input_size = x.shape
    H = hidden_dim
    layout, nrows = make_layout(input_size, H)
    packed = pack_params(params, layout, nrows, H)

    kernel = functools.partial(gru_kernel, layout=layout, input_size=input_size,
                               hidden_dim=H, seq_len=T)
    vmem = pl.BlockSpec(memory_space=pltpu.MemorySpace.VMEM)

    flops = (2 * T * input_size * 3 * H        # layer-0 input projection
             + 2 * T * H * 3 * H               # layer-1 per-step input projection
             + NUM_LAYERS * 2 * T * H * 3 * H  # recurrence matmuls
             + 2 * T * H)                      # head
    cost = pl.CostEstimate(
        flops=flops,
        transcendentals=NUM_LAYERS * 3 * T * H,
        bytes_accessed=4 * (T * input_size + nrows * 3 * H + T),
    )

    return pl.pallas_call(
        kernel,
        out_shape=jax.ShapeDtypeStruct((T, 1), jnp.float32),
        in_specs=[vmem, vmem],
        out_specs=vmem,
        cost_estimate=cost,
    )(x, packed)


# ----------------------------------------------------------------------------
# Pure-JAX reference mirroring torch.nn.GRU + ReLU + Linear
# ----------------------------------------------------------------------------
def gru_reference(x, p):
    H = p["whh0"].shape[1]

    def layer(inp, wih, whh, bih, bhh):
        h = jnp.zeros((1, H), jnp.float32)
        outs = []
        for t in range(inp.shape[0]):
            xg = inp[t:t + 1] @ wih.T + bih
            hg = h @ whh.T + bhh
            r = jax.nn.sigmoid(xg[:, 0:H] + hg[:, 0:H])
            z = jax.nn.sigmoid(xg[:, H:2 * H] + hg[:, H:2 * H])
            n = jnp.tanh(xg[:, 2 * H:3 * H] + r * hg[:, 2 * H:3 * H])
            h = (1.0 - z) * n + z * h
            outs.append(h)
        return jnp.concatenate(outs, axis=0)

    o0 = layer(x, p["wih0"], p["whh0"], p["bih0"], p["bhh0"])
    o1 = layer(o0, p["wih1"], p["whh1"], p["bih1"], p["bhh1"])
    return jnp.maximum(o1, 0.0) @ p["wfc"].T + p["bfc"]


def init_params(key, input_size, hidden_dim):
    """PyTorch-shaped params: uniform(-1/sqrt(H), 1/sqrt(H))."""
    k = 1.0 / jnp.sqrt(hidden_dim)
    keys = jax.random.split(key, 11)
    u = lambda kk, shape: jax.random.uniform(kk, shape, jnp.float32, -k, k)
    H3 = 3 * hidden_dim
    return {
        "wih0": u(keys[0], (H3, input_size)),
        "whh0": u(keys[1], (H3, hidden_dim)),
        "bih0": u(keys[2], (1, H3)),
        "bhh0": u(keys[3], (1, H3)),
        "wih1": u(keys[4], (H3, hidden_dim)),
        "whh1": u(keys[5], (H3, hidden_dim)),
        "bih1": u(keys[6], (1, H3)),
        "bhh1": u(keys[7], (1, H3)),
        "wfc": u(keys[8], (1, hidden_dim)),
        "bfc": u(keys[9], (1, 1)),
    }


if __name__ == "__main__":
    SEQ_LEN = 8       # training_lookback-style window
    INPUT_SIZE = 4    # len(dataframe.columns)
    HIDDEN_DIM = 32

    key = jax.random.PRNGKey(0)
    kx, kp = jax.random.split(key)
    x = jax.random.normal(kx, (SEQ_LEN, INPUT_SIZE), jnp.float32)
    params = init_params(kp, INPUT_SIZE, HIDDEN_DIM)

    out = gru_forward(x, params, HIDDEN_DIM)
    out = jax.block_until_ready(out)

    ref = gru_reference(x, params)
    assert out.shape == (SEQ_LEN, 1)
    assert jnp.allclose(out, ref, atol=1e-5, rtol=1e-5), "mismatch vs reference"

    print("KERNEL_OK")
</pallas_src>

<mosaic_0001>
module attributes {stable_mosaic.version = 11 : i64} {
  func.func @gru_kernel(%arg0: memref<8x4xf32, #tpu.memory_space<vmem>>, %arg1: memref<152x96xf32, #tpu.memory_space<vmem>>, %arg2: memref<8x1xf32, #tpu.memory_space<vmem>>) attributes {dimension_semantics = [], scalar_prefetch = 0 : i64, scratch_operands = 0 : i64, tpu.core_type = #tpu.core_type<tc>} {
    %c0 = arith.constant 0 : index
    %c0_0 = arith.constant 0 : index
    %0 = vector.load %arg1[%c0, %c0_0] : memref<152x96xf32, #tpu.memory_space<vmem>>, vector<4x96xf32>
    %c8 = arith.constant 8 : index
    %c0_1 = arith.constant 0 : index
    %1 = vector.load %arg1[%c8, %c0_1] : memref<152x96xf32, #tpu.memory_space<vmem>>, vector<1x96xf32>
    %c16 = arith.constant 16 : index
    %c0_2 = arith.constant 0 : index
    %2 = vector.load %arg1[%c16, %c0_2] : memref<152x96xf32, #tpu.memory_space<vmem>>, vector<32x96xf32>
    %c48 = arith.constant 48 : index
    %c0_3 = arith.constant 0 : index
    %3 = vector.load %arg1[%c48, %c0_3] : memref<152x96xf32, #tpu.memory_space<vmem>>, vector<1x96xf32>
    %c56 = arith.constant 56 : index
    %c0_4 = arith.constant 0 : index
    %4 = vector.load %arg1[%c56, %c0_4] : memref<152x96xf32, #tpu.memory_space<vmem>>, vector<32x96xf32>
    %c88 = arith.constant 88 : index
    %c0_5 = arith.constant 0 : index
    %5 = vector.load %arg1[%c88, %c0_5] : memref<152x96xf32, #tpu.memory_space<vmem>>, vector<1x96xf32>
    %c96 = arith.constant 96 : index
    %c0_6 = arith.constant 0 : index
    %6 = vector.load %arg1[%c96, %c0_6] : memref<152x96xf32, #tpu.memory_space<vmem>>, vector<32x96xf32>
    %c128 = arith.constant 128 : index
    %c0_7 = arith.constant 0 : index
    %7 = vector.load %arg1[%c128, %c0_7] : memref<152x96xf32, #tpu.memory_space<vmem>>, vector<1x96xf32>
    %c0_8 = arith.constant 0 : index
    %c0_9 = arith.constant 0 : index
    %8 = vector.load %arg0[%c0_8, %c0_9] : memref<8x4xf32, #tpu.memory_space<vmem>>, vector<8x4xf32>
    %cst = arith.constant dense<0.000000e+00> : vector<8x96xf32>
    %9 = tpu.matmul %8, %0, %cst {dimension_numbers = #tpu.dot_dimension_numbers<[1], [0], [0], [1], [0, 0, 1, 1], [], []>} : vector<8x4xf32>, vector<4x96xf32>, vector<8x96xf32> -> vector<8x96xf32>
    %10 = vector.broadcast %1 : vector<1x96xf32> to vector<8x96xf32>
    %11 = arith.addf %9, %10 : vector<8x96xf32>
    %cst_10 = arith.constant 0.000000e+00 : f32
    %12 = vector.broadcast %cst_10 : f32 to vector<1x32xf32>
    %cst_11 = arith.constant 0.000000e+00 : f32
    %13 = vector.broadcast %cst_11 : f32 to vector<1x32xf32>
    %14 = vector.extract_strided_slice %11 {offsets = [0, 0], sizes = [1, 96], strides = [1, 1]} : vector<8x96xf32> to vector<1x96xf32>
    %cst_12 = arith.constant dense<0.000000e+00> : vector<1x96xf32>
    %15 = tpu.matmul %12, %2, %cst_12 {dimension_numbers = #tpu.dot_dimension_numbers<[1], [0], [0], [1], [0, 0, 1, 1], [], []>} : vector<1x32xf32>, vector<32x96xf32>, vector<1x96xf32> -> vector<1x96xf32>
    %16 = arith.addf %15, %3 : vector<1x96xf32>
    %17 = vector.extract_strided_slice %14 {offsets = [0, 0], sizes = [1, 32], strides = [1, 1]} : vector<1x96xf32> to vector<1x32xf32>
    %18 = vector.extract_strided_slice %16 {offsets = [0, 0], sizes = [1, 32], strides = [1, 1]} : vector<1x96xf32> to vector<1x32xf32>
    %19 = arith.addf %17, %18 : vector<1x32xf32>
    %20 = arith.negf %19 : vector<1x32xf32>
    %21 = math.exp %20 : vector<1x32xf32>
    %cst_13 = arith.constant 1.000000e+00 : f32
    %22 = vector.broadcast %cst_13 : f32 to vector<1x32xf32>
    %23 = arith.addf %22, %21 : vector<1x32xf32>
    %24 = arith.divf %22, %23 : vector<1x32xf32>
    %25 = vector.extract_strided_slice %14 {offsets = [0, 32], sizes = [1, 32], strides = [1, 1]} : vector<1x96xf32> to vector<1x32xf32>
    %26 = vector.extract_strided_slice %16 {offsets = [0, 32], sizes = [1, 32], strides = [1, 1]} : vector<1x96xf32> to vector<1x32xf32>
    %27 = arith.addf %25, %26 : vector<1x32xf32>
    %28 = arith.negf %27 : vector<1x32xf32>
    %29 = math.exp %28 : vector<1x32xf32>
    %cst_14 = arith.constant 1.000000e+00 : f32
    %30 = vector.broadcast %cst_14 : f32 to vector<1x32xf32>
    %31 = arith.addf %30, %29 : vector<1x32xf32>
    %32 = arith.divf %30, %31 : vector<1x32xf32>
    %33 = vector.extract_strided_slice %14 {offsets = [0, 64], sizes = [1, 32], strides = [1, 1]} : vector<1x96xf32> to vector<1x32xf32>
    %34 = vector.extract_strided_slice %16 {offsets = [0, 64], sizes = [1, 32], strides = [1, 1]} : vector<1x96xf32> to vector<1x32xf32>
    %35 = arith.mulf %24, %34 : vector<1x32xf32>
    %36 = arith.addf %33, %35 : vector<1x32xf32>
    %37 = math.tanh %36 : vector<1x32xf32>
    %cst_15 = arith.constant 1.000000e+00 : f32
    %38 = vector.broadcast %cst_15 : f32 to vector<1x32xf32>
    %39 = arith.subf %38, %32 : vector<1x32xf32>
    %40 = arith.mulf %39, %37 : vector<1x32xf32>
    %41 = arith.mulf %32, %12 : vector<1x32xf32>
    %42 = arith.addf %40, %41 : vector<1x32xf32>
    %cst_16 = arith.constant dense<0.000000e+00> : vector<1x96xf32>
    %43 = tpu.matmul %42, %4, %cst_16 {dimension_numbers = #tpu.dot_dimension_numbers<[1], [0], [0], [1], [0, 0, 1, 1], [], []>} : vector<1x32xf32>, vector<32x96xf32>, vector<1x96xf32> -> vector<1x96xf32>
    %44 = arith.addf %43, %5 : vector<1x96xf32>
    %cst_17 = arith.constant dense<0.000000e+00> : vector<1x96xf32>
    %45 = tpu.matmul %13, %6, %cst_17 {dimension_numbers = #tpu.dot_dimension_numbers<[1], [0], [0], [1], [0, 0, 1, 1], [], []>} : vector<1x32xf32>, vector<32x96xf32>, vector<1x96xf32> -> vector<1x96xf32>
    %46 = arith.addf %45, %7 : vector<1x96xf32>
    %47 = vector.extract_strided_slice %44 {offsets = [0, 0], sizes = [1, 32], strides = [1, 1]} : vector<1x96xf32> to vector<1x32xf32>
    %48 = vector.extract_strided_slice %46 {offsets = [0, 0], sizes = [1, 32], strides = [1, 1]} : vector<1x96xf32> to vector<1x32xf32>
    %49 = arith.addf %47, %48 : vector<1x32xf32>
    %50 = arith.negf %49 : vector<1x32xf32>
    %51 = math.exp %50 : vector<1x32xf32>
    %cst_18 = arith.constant 1.000000e+00 : f32
    %52 = vector.broadcast %cst_18 : f32 to vector<1x32xf32>
    %53 = arith.addf %52, %51 : vector<1x32xf32>
    %54 = arith.divf %52, %53 : vector<1x32xf32>
    %55 = vector.extract_strided_slice %44 {offsets = [0, 32], sizes = [1, 32], strides = [1, 1]} : vector<1x96xf32> to vector<1x32xf32>
    %56 = vector.extract_strided_slice %46 {offsets = [0, 32], sizes = [1, 32], strides = [1, 1]} : vector<1x96xf32> to vector<1x32xf32>
    %57 = arith.addf %55, %56 : vector<1x32xf32>
    %58 = arith.negf %57 : vector<1x32xf32>
    %59 = math.exp %58 : vector<1x32xf32>
    %cst_19 = arith.constant 1.000000e+00 : f32
    %60 = vector.broadcast %cst_19 : f32 to vector<1x32xf32>
    %61 = arith.addf %60, %59 : vector<1x32xf32>
    %62 = arith.divf %60, %61 : vector<1x32xf32>
    %63 = vector.extract_strided_slice %44 {offsets = [0, 64], sizes = [1, 32], strides = [1, 1]} : vector<1x96xf32> to vector<1x32xf32>
    %64 = vector.extract_strided_slice %46 {offsets = [0, 64], sizes = [1, 32], strides = [1, 1]} : vector<1x96xf32> to vector<1x32xf32>
    %65 = arith.mulf %54, %64 : vector<1x32xf32>
    %66 = arith.addf %63, %65 : vector<1x32xf32>
    %67 = math.tanh %66 : vector<1x32xf32>
    %cst_20 = arith.constant 1.000000e+00 : f32
    %68 = vector.broadcast %cst_20 : f32 to vector<1x32xf32>
    %69 = arith.subf %68, %62 : vector<1x32xf32>
    %70 = arith.mulf %69, %67 : vector<1x32xf32>
    %71 = arith.mulf %62, %13 : vector<1x32xf32>
    %72 = arith.addf %70, %71 : vector<1x32xf32>
    %73 = vector.extract_strided_slice %11 {offsets = [1, 0], sizes = [1, 96], strides = [1, 1]} : vector<8x96xf32> to vector<1x96xf32>
    %cst_21 = arith.constant dense<0.000000e+00> : vector<1x96xf32>
    %74 = tpu.matmul %42, %2, %cst_21 {dimension_numbers = #tpu.dot_dimension_numbers<[1], [0], [0], [1], [0, 0, 1, 1], [], []>} : vector<1x32xf32>, vector<32x96xf32>, vector<1x96xf32> -> vector<1x96xf32>
    %75 = arith.addf %74, %3 : vector<1x96xf32>
    %76 = vector.extract_strided_slice %73 {offsets = [0, 0], sizes = [1, 32], strides = [1, 1]} : vector<1x96xf32> to vector<1x32xf32>
    %77 = vector.extract_strided_slice %75 {offsets = [0, 0], sizes = [1, 32], strides = [1, 1]} : vector<1x96xf32> to vector<1x32xf32>
    %78 = arith.addf %76, %77 : vector<1x32xf32>
    %79 = arith.negf %78 : vector<1x32xf32>
    %80 = math.exp %79 : vector<1x32xf32>
    %cst_22 = arith.constant 1.000000e+00 : f32
    %81 = vector.broadcast %cst_22 : f32 to vector<1x32xf32>
    %82 = arith.addf %81, %80 : vector<1x32xf32>
    %83 = arith.divf %81, %82 : vector<1x32xf32>
    %84 = vector.extract_strided_slice %73 {offsets = [0, 32], sizes = [1, 32], strides = [1, 1]} : vector<1x96xf32> to vector<1x32xf32>
    %85 = vector.extract_strided_slice %75 {offsets = [0, 32], sizes = [1, 32], strides = [1, 1]} : vector<1x96xf32> to vector<1x32xf32>
    %86 = arith.addf %84, %85 : vector<1x32xf32>
    %87 = arith.negf %86 : vector<1x32xf32>
    %88 = math.exp %87 : vector<1x32xf32>
    %cst_23 = arith.constant 1.000000e+00 : f32
    %89 = vector.broadcast %cst_23 : f32 to vector<1x32xf32>
    %90 = arith.addf %89, %88 : vector<1x32xf32>
    %91 = arith.divf %89, %90 : vector<1x32xf32>
    %92 = vector.extract_strided_slice %73 {offsets = [0, 64], sizes = [1, 32], strides = [1, 1]} : vector<1x96xf32> to vector<1x32xf32>
    %93 = vector.extract_strided_slice %75 {offsets = [0, 64], sizes = [1, 32], strides = [1, 1]} : vector<1x96xf32> to vector<1x32xf32>
    %94 = arith.mulf %83, %93 : vector<1x32xf32>
    %95 = arith.addf %92, %94 : vector<1x32xf32>
    %96 = math.tanh %95 : vector<1x32xf32>
    %cst_24 = arith.constant 1.000000e+00 : f32
    %97 = vector.broadcast %cst_24 : f32 to vector<1x32xf32>
    %98 = arith.subf %97, %91 : vector<1x32xf32>
    %99 = arith.mulf %98, %96 : vector<1x32xf32>
    %100 = arith.mulf %91, %42 : vector<1x32xf32>
    %101 = arith.addf %99, %100 : vector<1x32xf32>
    %cst_25 = arith.constant dense<0.000000e+00> : vector<1x96xf32>
    %102 = tpu.matmul %101, %4, %cst_25 {dimension_numbers = #tpu.dot_dimension_numbers<[1], [0], [0], [1], [0, 0, 1, 1], [], []>} : vector<1x32xf32>, vector<32x96xf32>, vector<1x96xf32> -> vector<1x96xf32>
    %103 = arith.addf %102, %5 : vector<1x96xf32>
    %cst_26 = arith.constant dense<0.000000e+00> : vector<1x96xf32>
    %104 = tpu.matmul %72, %6, %cst_26 {dimension_numbers = #tpu.dot_dimension_numbers<[1], [0], [0], [1], [0, 0, 1, 1], [], []>} : vector<1x32xf32>, vector<32x96xf32>, vector<1x96xf32> -> vector<1x96xf32>
    %105 = arith.addf %104, %7 : vector<1x96xf32>
    %106 = vector.extract_strided_slice %103 {offsets = [0, 0], sizes = [1, 32], strides = [1, 1]} : vector<1x96xf32> to vector<1x32xf32>
    %107 = vector.extract_strided_slice %105 {offsets = [0, 0], sizes = [1, 32], strides = [1, 1]} : vector<1x96xf32> to vector<1x32xf32>
    %108 = arith.addf %106, %107 : vector<1x32xf32>
    %109 = arith.negf %108 : vector<1x32xf32>
    %110 = math.exp %109 : vector<1x32xf32>
    %cst_27 = arith.constant 1.000000e+00 : f32
    %111 = vector.broadcast %cst_27 : f32 to vector<1x32xf32>
    %112 = arith.addf %111, %110 : vector<1x32xf32>
    %113 = arith.divf %111, %112 : vector<1x32xf32>
    %114 = vector.extract_strided_slice %103 {offsets = [0, 32], sizes = [1, 32], strides = [1, 1]} : vector<1x96xf32> to vector<1x32xf32>
    %115 = vector.extract_strided_slice %105 {offsets = [0, 32], sizes = [1, 32], strides = [1, 1]} : vector<1x96xf32> to vector<1x32xf32>
    %116 = arith.addf %114, %115 : vector<1x32xf32>
    %117 = arith.negf %116 : vector<1x32xf32>
    %118 = math.exp %117 : vector<1x32xf32>
    %cst_28 = arith.constant 1.000000e+00 : f32
    %119 = vector.broadcast %cst_28 : f32 to vector<1x32xf32>
    %120 = arith.addf %119, %118 : vector<1x32xf32>
    %121 = arith.divf %119, %120 : vector<1x32xf32>
    %122 = vector.extract_strided_slice %103 {offsets = [0, 64], sizes = [1, 32], strides = [1, 1]} : vector<1x96xf32> to vector<1x32xf32>
    %123 = vector.extract_strided_slice %105 {offsets = [0, 64], sizes = [1, 32], strides = [1, 1]} : vector<1x96xf32> to vector<1x32xf32>
    %124 = arith.mulf %113, %123 : vector<1x32xf32>
    %125 = arith.addf %122, %124 : vector<1x32xf32>
    %126 = math.tanh %125 : vector<1x32xf32>
    %cst_29 = arith.constant 1.000000e+00 : f32
    %127 = vector.broadcast %cst_29 : f32 to vector<1x32xf32>
    %128 = arith.subf %127, %121 : vector<1x32xf32>
    %129 = arith.mulf %128, %126 : vector<1x32xf32>
    %130 = arith.mulf %121, %72 : vector<1x32xf32>
    %131 = arith.addf %129, %130 : vector<1x32xf32>
    %132 = vector.extract_strided_slice %11 {offsets = [2, 0], sizes = [1, 96], strides = [1, 1]} : vector<8x96xf32> to vector<1x96xf32>
    %cst_30 = arith.constant dense<0.000000e+00> : vector<1x96xf32>
    %133 = tpu.matmul %101, %2, %cst_30 {dimension_numbers = #tpu.dot_dimension_numbers<[1], [0], [0], [1], [0, 0, 1, 1], [], []>} : vector<1x32xf32>, vector<32x96xf32>, vector<1x96xf32> -> vector<1x96xf32>
    %134 = arith.addf %133, %3 : vector<1x96xf32>
    %135 = vector.extract_strided_slice %132 {offsets = [0, 0], sizes = [1, 32], strides = [1, 1]} : vector<1x96xf32> to vector<1x32xf32>
    %136 = vector.extract_strided_slice %134 {offsets = [0, 0], sizes = [1, 32], strides = [1, 1]} : vector<1x96xf32> to vector<1x32xf32>
    %137 = arith.addf %135, %136 : vector<1x32xf32>
    %138 = arith.negf %137 : vector<1x32xf32>
    %139 = math.exp %138 : vector<1x32xf32>
    %cst_31 = arith.constant 1.000000e+00 : f32
    %140 = vector.broadcast %cst_31 : f32 to vector<1x32xf32>
    %141 = arith.addf %140, %139 : vector<1x32xf32>
    %142 = arith.divf %140, %141 : vector<1x32xf32>
    %143 = vector.extract_strided_slice %132 {offsets = [0, 32], sizes = [1, 32], strides = [1, 1]} : vector<1x96xf32> to vector<1x32xf32>
    %144 = vector.extract_strided_slice %134 {offsets = [0, 32], sizes = [1, 32], strides = [1, 1]} : vector<1x96xf32> to vector<1x32xf32>
    %145 = arith.addf %143, %144 : vector<1x32xf32>
    %146 = arith.negf %145 : vector<1x32xf32>
    %147 = math.exp %146 : vector<1x32xf32>
    %cst_32 = arith.constant 1.000000e+00 : f32
    %148 = vector.broadcast %cst_32 : f32 to vector<1x32xf32>
    %149 = arith.addf %148, %147 : vector<1x32xf32>
    %150 = arith.divf %148, %149 : vector<1x32xf32>
    %151 = vector.extract_strided_slice %132 {offsets = [0, 64], sizes = [1, 32], strides = [1, 1]} : vector<1x96xf32> to vector<1x32xf32>
    %152 = vector.extract_strided_slice %134 {offsets = [0, 64], sizes = [1, 32], strides = [1, 1]} : vector<1x96xf32> to vector<1x32xf32>
    %153 = arith.mulf %142, %152 : vector<1x32xf32>
    %154 = arith.addf %151, %153 : vector<1x32xf32>
    %155 = math.tanh %154 : vector<1x32xf32>
    %cst_33 = arith.constant 1.000000e+00 : f32
    %156 = vector.broadcast %cst_33 : f32 to vector<1x32xf32>
    %157 = arith.subf %156, %150 : vector<1x32xf32>
    %158 = arith.mulf %157, %155 : vector<1x32xf32>
    %159 = arith.mulf %150, %101 : vector<1x32xf32>
    %160 = arith.addf %158, %159 : vector<1x32xf32>
    %cst_34 = arith.constant dense<0.000000e+00> : vector<1x96xf32>
    %161 = tpu.matmul %160, %4, %cst_34 {dimension_numbers = #tpu.dot_dimension_numbers<[1], [0], [0], [1], [0, 0, 1, 1], [], []>} : vector<1x32xf32>, vector<32x96xf32>, vector<1x96xf32> -> vector<1x96xf32>
    %162 = arith.addf %161, %5 : vector<1x96xf32>
    %cst_35 = arith.constant dense<0.000000e+00> : vector<1x96xf32>
    %163 = tpu.matmul %131, %6, %cst_35 {dimension_numbers = #tpu.dot_dimension_numbers<[1], [0], [0], [1], [0, 0, 1, 1], [], []>} : vector<1x32xf32>, vector<32x96xf32>, vector<1x96xf32> -> vector<1x96xf32>
    %164 = arith.addf %163, %7 : vector<1x96xf32>
    %165 = vector.extract_strided_slice %162 {offsets = [0, 0], sizes = [1, 32], strides = [1, 1]} : vector<1x96xf32> to vector<1x32xf32>
    %166 = vector.extract_strided_slice %164 {offsets = [0, 0], sizes = [1, 32], strides = [1, 1]} : vector<1x96xf32> to vector<1x32xf32>
    %167 = arith.addf %165, %166 : vector<1x32xf32>
    %168 = arith.negf %167 : vector<1x32xf32>
    %169 = math.exp %168 : vector<1x32xf32>
    %cst_36 = arith.constant 1.000000e+00 : f32
    %170 = vector.broadcast %cst_36 : f32 to vector<1x32xf32>
    %171 = arith.addf %170, %169 : vector<1x32xf32>
    %172 = arith.divf %170, %171 : vector<1x32xf32>
    %173 = vector.extract_strided_slice %162 {offsets = [0, 32], sizes = [1, 32], strides = [1, 1]} : vector<1x96xf32> to vector<1x32xf32>
    %174 = vector.extract_strided_slice %164 {offsets = [0, 32], sizes = [1, 32], strides = [1, 1]} : vector<1x96xf32> to vector<1x32xf32>
    %175 = arith.addf %173, %174 : vector<1x32xf32>
    %176 = arith.negf %175 : vector<1x32xf32>
    %177 = math.exp %176 : vector<1x32xf32>
    %cst_37 = arith.constant 1.000000e+00 : f32
    %178 = vector.broadcast %cst_37 : f32 to vector<1x32xf32>
    %179 = arith.addf %178, %177 : vector<1x32xf32>
    %180 = arith.divf %178, %179 : vector<1x32xf32>
    %181 = vector.extract_strided_slice %162 {offsets = [0, 64], sizes = [1, 32], strides = [1, 1]} : vector<1x96xf32> to vector<1x32xf32>
    %182 = vector.extract_strided_slice %164 {offsets = [0, 64], sizes = [1, 32], strides = [1, 1]} : vector<1x96xf32> to vector<1x32xf32>
    %183 = arith.mulf %172, %182 : vector<1x32xf32>
    %184 = arith.addf %181, %183 : vector<1x32xf32>
    %185 = math.tanh %184 : vector<1x32xf32>
    %cst_38 = arith.constant 1.000000e+00 : f32
    %186 = vector.broadcast %cst_38 : f32 to vector<1x32xf32>
    %187 = arith.subf %186, %180 : vector<1x32xf32>
    %188 = arith.mulf %187, %185 : vector<1x32xf32>
    %189 = arith.mulf %180, %131 : vector<1x32xf32>
    %190 = arith.addf %188, %189 : vector<1x32xf32>
    %191 = vector.extract_strided_slice %11 {offsets = [3, 0], sizes = [1, 96], strides = [1, 1]} : vector<8x96xf32> to vector<1x96xf32>
    %cst_39 = arith.constant dense<0.000000e+00> : vector<1x96xf32>
    %192 = tpu.matmul %160, %2, %cst_39 {dimension_numbers = #tpu.dot_dimension_numbers<[1], [0], [0], [1], [0, 0, 1, 1], [], []>} : vector<1x32xf32>, vector<32x96xf32>, vector<1x96xf32> -> vector<1x96xf32>
    %193 = arith.addf %192, %3 : vector<1x96xf32>
    %194 = vector.extract_strided_slice %191 {offsets = [0, 0], sizes = [1, 32], strides = [1, 1]} : vector<1x96xf32> to vector<1x32xf32>
    %195 = vector.extract_strided_slice %193 {offsets = [0, 0], sizes = [1, 32], strides = [1, 1]} : vector<1x96xf32> to vector<1x32xf32>
    %196 = arith.addf %194, %195 : vector<1x32xf32>
    %197 = arith.negf %196 : vector<1x32xf32>
    %198 = math.exp %197 : vector<1x32xf32>
    %cst_40 = arith.constant 1.000000e+00 : f32
    %199 = vector.broadcast %cst_40 : f32 to vector<1x32xf32>
    %200 = arith.addf %199, %198 : vector<1x32xf32>
    %201 = arith.divf %199, %200 : vector<1x32xf32>
    %202 = vector.extract_strided_slice %191 {offsets = [0, 32], sizes = [1, 32], strides = [1, 1]} : vector<1x96xf32> to vector<1x32xf32>
    %203 = vector.extract_strided_slice %193 {offsets = [0, 32], sizes = [1, 32], strides = [1, 1]} : vector<1x96xf32> to vector<1x32xf32>
    %204 = arith.addf %202, %203 : vector<1x32xf32>
    %205 = arith.negf %204 : vector<1x32xf32>
    %206 = math.exp %205 : vector<1x32xf32>
    %cst_41 = arith.constant 1.000000e+00 : f32
    %207 = vector.broadcast %cst_41 : f32 to vector<1x32xf32>
    %208 = arith.addf %207, %206 : vector<1x32xf32>
    %209 = arith.divf %207, %208 : vector<1x32xf32>
    %210 = vector.extract_strided_slice %191 {offsets = [0, 64], sizes = [1, 32], strides = [1, 1]} : vector<1x96xf32> to vector<1x32xf32>
    %211 = vector.extract_strided_slice %193 {offsets = [0, 64], sizes = [1, 32], strides = [1, 1]} : vector<1x96xf32> to vector<1x32xf32>
    %212 = arith.mulf %201, %211 : vector<1x32xf32>
    %213 = arith.addf %210, %212 : vector<1x32xf32>
    %214 = math.tanh %213 : vector<1x32xf32>
    %cst_42 = arith.constant 1.000000e+00 : f32
    %215 = vector.broadcast %cst_42 : f32 to vector<1x32xf32>
    %216 = arith.subf %215, %209 : vector<1x32xf32>
    %217 = arith.mulf %216, %214 : vector<1x32xf32>
    %218 = arith.mulf %209, %160 : vector<1x32xf32>
    %219 = arith.addf %217, %218 : vector<1x32xf32>
    %cst_43 = arith.constant dense<0.000000e+00> : vector<1x96xf32>
    %220 = tpu.matmul %219, %4, %cst_43 {dimension_numbers = #tpu.dot_dimension_numbers<[1], [0], [0], [1], [0, 0, 1, 1], [], []>} : vector<1x32xf32>, vector<32x96xf32>, vector<1x96xf32> -> vector<1x96xf32>
    %221 = arith.addf %220, %5 : vector<1x96xf32>
    %cst_44 = arith.constant dense<0.000000e+00> : vector<1x96xf32>
    %222 = tpu.matmul %190, %6, %cst_44 {dimension_numbers = #tpu.dot_dimension_numbers<[1], [0], [0], [1], [0, 0, 1, 1], [], []>} : vector<1x32xf32>, vector<32x96xf32>, vector<1x96xf32> -> vector<1x96xf32>
    %223 = arith.addf %222, %7 : vector<1x96xf32>
    %224 = vector.extract_strided_slice %221 {offsets = [0, 0], sizes = [1, 32], strides = [1, 1]} : vector<1x96xf32> to vector<1x32xf32>
    %225 = vector.extract_strided_slice %223 {offsets = [0, 0], sizes = [1, 32], strides = [1, 1]} : vector<1x96xf32> to vector<1x32xf32>
    %226 = arith.addf %224, %225 : vector<1x32xf32>
    %227 = arith.negf %226 : vector<1x32xf32>
    %228 = math.exp %227 : vector<1x32xf32>
    %cst_45 = arith.constant 1.000000e+00 : f32
    %229 = vector.broadcast %cst_45 : f32 to vector<1x32xf32>
    %230 = arith.addf %229, %228 : vector<1x32xf32>
    %231 = arith.divf %229, %230 : vector<1x32xf32>
    %232 = vector.extract_strided_slice %221 {offsets = [0, 32], sizes = [1, 32], strides = [1, 1]} : vector<1x96xf32> to vector<1x32xf32>
    %233 = vector.extract_strided_slice %223 {offsets = [0, 32], sizes = [1, 32], strides = [1, 1]} : vector<1x96xf32> to vector<1x32xf32>
    %234 = arith.addf %232, %233 : vector<1x32xf32>
    %235 = arith.negf %234 : vector<1x32xf32>
    %236 = math.exp %235 : vector<1x32xf32>
    %cst_46 = arith.constant 1.000000e+00 : f32
    %237 = vector.broadcast %cst_46 : f32 to vector<1x32xf32>
    %238 = arith.addf %237, %236 : vector<1x32xf32>
    %239 = arith.divf %237, %238 : vector<1x32xf32>
    %240 = vector.extract_strided_slice %221 {offsets = [0, 64], sizes = [1, 32], strides = [1, 1]} : vector<1x96xf32> to vector<1x32xf32>
    %241 = vector.extract_strided_slice %223 {offsets = [0, 64], sizes = [1, 32], strides = [1, 1]} : vector<1x96xf32> to vector<1x32xf32>
    %242 = arith.mulf %231, %241 : vector<1x32xf32>
    %243 = arith.addf %240, %242 : vector<1x32xf32>
    %244 = math.tanh %243 : vector<1x32xf32>
    %cst_47 = arith.constant 1.000000e+00 : f32
    %245 = vector.broadcast %cst_47 : f32 to vector<1x32xf32>
    %246 = arith.subf %245, %239 : vector<1x32xf32>
    %247 = arith.mulf %246, %244 : vector<1x32xf32>
    %248 = arith.mulf %239, %190 : vector<1x32xf32>
    %249 = arith.addf %247, %248 : vector<1x32xf32>
    %250 = vector.extract_strided_slice %11 {offsets = [4, 0], sizes = [1, 96], strides = [1, 1]} : vector<8x96xf32> to vector<1x96xf32>
    %cst_48 = arith.constant dense<0.000000e+00> : vector<1x96xf32>
    %251 = tpu.matmul %219, %2, %cst_48 {dimension_numbers = #tpu.dot_dimension_numbers<[1], [0], [0], [1], [0, 0, 1, 1], [], []>} : vector<1x32xf32>, vector<32x96xf32>, vector<1x96xf32> -> vector<1x96xf32>
    %252 = arith.addf %251, %3 : vector<1x96xf32>
    %253 = vector.extract_strided_slice %250 {offsets = [0, 0], sizes = [1, 32], strides = [1, 1]} : vector<1x96xf32> to vector<1x32xf32>
    %254 = vector.extract_strided_slice %252 {offsets = [0, 0], sizes = [1, 32], strides = [1, 1]} : vector<1x96xf32> to vector<1x32xf32>
    %255 = arith.addf %253, %254 : vector<1x32xf32>
    %256 = arith.negf %255 : vector<1x32xf32>
    %257 = math.exp %256 : vector<1x32xf32>
    %cst_49 = arith.constant 1.000000e+00 : f32
    %258 = vector.broadcast %cst_49 : f32 to vector<1x32xf32>
    %259 = arith.addf %258, %257 : vector<1x32xf32>
    %260 = arith.divf %258, %259 : vector<1x32xf32>
    %261 = vector.extract_strided_slice %250 {offsets = [0, 32], sizes = [1, 32], strides = [1, 1]} : vector<1x96xf32> to vector<1x32xf32>
    %262 = vector.extract_strided_slice %252 {offsets = [0, 32], sizes = [1, 32], strides = [1, 1]} : vector<1x96xf32> to vector<1x32xf32>
    %263 = arith.addf %261, %262 : vector<1x32xf32>
    %264 = arith.negf %263 : vector<1x32xf32>
    %265 = math.exp %264 : vector<1x32xf32>
    %cst_50 = arith.constant 1.000000e+00 : f32
    %266 = vector.broadcast %cst_50 : f32 to vector<1x32xf32>
    %267 = arith.addf %266, %265 : vector<1x32xf32>
    %268 = arith.divf %266, %267 : vector<1x32xf32>
    %269 = vector.extract_strided_slice %250 {offsets = [0, 64], sizes = [1, 32], strides = [1, 1]} : vector<1x96xf32> to vector<1x32xf32>
    %270 = vector.extract_strided_slice %252 {offsets = [0, 64], sizes = [1, 32], strides = [1, 1]} : vector<1x96xf32> to vector<1x32xf32>
    %271 = arith.mulf %260, %270 : vector<1x32xf32>
    %272 = arith.addf %269, %271 : vector<1x32xf32>
    %273 = math.tanh %272 : vector<1x32xf32>
    %cst_51 = arith.constant 1.000000e+00 : f32
    %274 = vector.broadcast %cst_51 : f32 to vector<1x32xf32>
    %275 = arith.subf %274, %268 : vector<1x32xf32>
    %276 = arith.mulf %275, %273 : vector<1x32xf32>
    %277 = arith.mulf %268, %219 : vector<1x32xf32>
    %278 = arith.addf %276, %277 : vector<1x32xf32>
    %cst_52 = arith.constant dense<0.000000e+00> : vector<1x96xf32>
    %279 = tpu.matmul %278, %4, %cst_52 {dimension_numbers = #tpu.dot_dimension_numbers<[1], [0], [0], [1], [0, 0, 1, 1], [], []>} : vector<1x32xf32>, vector<32x96xf32>, vector<1x96xf32> -> vector<1x96xf32>
    %280 = arith.addf %279, %5 : vector<1x96xf32>
    %cst_53 = arith.constant dense<0.000000e+00> : vector<1x96xf32>
    %281 = tpu.matmul %249, %6, %cst_53 {dimension_numbers = #tpu.dot_dimension_numbers<[1], [0], [0], [1], [0, 0, 1, 1], [], []>} : vector<1x32xf32>, vector<32x96xf32>, vector<1x96xf32> -> vector<1x96xf32>
    %282 = arith.addf %281, %7 : vector<1x96xf32>
    %283 = vector.extract_strided_slice %280 {offsets = [0, 0], sizes = [1, 32], strides = [1, 1]} : vector<1x96xf32> to vector<1x32xf32>
    %284 = vector.extract_strided_slice %282 {offsets = [0, 0], sizes = [1, 32], strides = [1, 1]} : vector<1x96xf32> to vector<1x32xf32>
    %285 = arith.addf %283, %284 : vector<1x32xf32>
    %286 = arith.negf %285 : vector<1x32xf32>
    %287 = math.exp %286 : vector<1x32xf32>
    %cst_54 = arith.constant 1.000000e+00 : f32
    %288 = vector.broadcast %cst_54 : f32 to vector<1x32xf32>
    %289 = arith.addf %288, %287 : vector<1x32xf32>
    %290 = arith.divf %288, %289 : vector<1x32xf32>
    %291 = vector.extract_strided_slice %280 {offsets = [0, 32], sizes = [1, 32], strides = [1, 1]} : vector<1x96xf32> to vector<1x32xf32>
    %292 = vector.extract_strided_slice %282 {offsets = [0, 32], sizes = [1, 32], strides = [1, 1]} : vector<1x96xf32> to vector<1x32xf32>
    %293 = arith.addf %291, %292 : vector<1x32xf32>
    %294 = arith.negf %293 : vector<1x32xf32>
    %295 = math.exp %294 : vector<1x32xf32>
    %cst_55 = arith.constant 1.000000e+00 : f32
    %296 = vector.broadcast %cst_55 : f32 to vector<1x32xf32>
    %297 = arith.addf %296, %295 : vector<1x32xf32>
    %298 = arith.divf %296, %297 : vector<1x32xf32>
    %299 = vector.extract_strided_slice %280 {offsets = [0, 64], sizes = [1, 32], strides = [1, 1]} : vector<1x96xf32> to vector<1x32xf32>
    %300 = vector.extract_strided_slice %282 {offsets = [0, 64], sizes = [1, 32], strides = [1, 1]} : vector<1x96xf32> to vector<1x32xf32>
    %301 = arith.mulf %290, %300 : vector<1x32xf32>
    %302 = arith.addf %299, %301 : vector<1x32xf32>
    %303 = math.tanh %302 : vector<1x32xf32>
    %cst_56 = arith.constant 1.000000e+00 : f32
    %304 = vector.broadcast %cst_56 : f32 to vector<1x32xf32>
    %305 = arith.subf %304, %298 : vector<1x32xf32>
    %306 = arith.mulf %305, %303 : vector<1x32xf32>
    %307 = arith.mulf %298, %249 : vector<1x32xf32>
    %308 = arith.addf %306, %307 : vector<1x32xf32>
    %309 = vector.extract_strided_slice %11 {offsets = [5, 0], sizes = [1, 96], strides = [1, 1]} : vector<8x96xf32> to vector<1x96xf32>
    %cst_57 = arith.constant dense<0.000000e+00> : vector<1x96xf32>
    %310 = tpu.matmul %278, %2, %cst_57 {dimension_numbers = #tpu.dot_dimension_numbers<[1], [0], [0], [1], [0, 0, 1, 1], [], []>} : vector<1x32xf32>, vector<32x96xf32>, vector<1x96xf32> -> vector<1x96xf32>
    %311 = arith.addf %310, %3 : vector<1x96xf32>
    %312 = vector.extract_strided_slice %309 {offsets = [0, 0], sizes = [1, 32], strides = [1, 1]} : vector<1x96xf32> to vector<1x32xf32>
    %313 = vector.extract_strided_slice %311 {offsets = [0, 0], sizes = [1, 32], strides = [1, 1]} : vector<1x96xf32> to vector<1x32xf32>
    %314 = arith.addf %312, %313 : vector<1x32xf32>
    %315 = arith.negf %314 : vector<1x32xf32>
    %316 = math.exp %315 : vector<1x32xf32>
    %cst_58 = arith.constant 1.000000e+00 : f32
    %317 = vector.broadcast %cst_58 : f32 to vector<1x32xf32>
    %318 = arith.addf %317, %316 : vector<1x32xf32>
    %319 = arith.divf %317, %318 : vector<1x32xf32>
    %320 = vector.extract_strided_slice %309 {offsets = [0, 32], sizes = [1, 32], strides = [1, 1]} : vector<1x96xf32> to vector<1x32xf32>
    %321 = vector.extract_strided_slice %311 {offsets = [0, 32], sizes = [1, 32], strides = [1, 1]} : vector<1x96xf32> to vector<1x32xf32>
    %322 = arith.addf %320, %321 : vector<1x32xf32>
    %323 = arith.negf %322 : vector<1x32xf32>
    %324 = math.exp %323 : vector<1x32xf32>
    %cst_59 = arith.constant 1.000000e+00 : f32
    %325 = vector.broadcast %cst_59 : f32 to vector<1x32xf32>
    %326 = arith.addf %325, %324 : vector<1x32xf32>
    %327 = arith.divf %325, %326 : vector<1x32xf32>
    %328 = vector.extract_strided_slice %309 {offsets = [0, 64], sizes = [1, 32], strides = [1, 1]} : vector<1x96xf32> to vector<1x32xf32>
    %329 = vector.extract_strided_slice %311 {offsets = [0, 64], sizes = [1, 32], strides = [1, 1]} : vector<1x96xf32> to vector<1x32xf32>
    %330 = arith.mulf %319, %329 : vector<1x32xf32>
    %331 = arith.addf %328, %330 : vector<1x32xf32>
    %332 = math.tanh %331 : vector<1x32xf32>
    %cst_60 = arith.constant 1.000000e+00 : f32
    %333 = vector.broadcast %cst_60 : f32 to vector<1x32xf32>
    %334 = arith.subf %333, %327 : vector<1x32xf32>
    %335 = arith.mulf %334, %332 : vector<1x32xf32>
    %336 = arith.mulf %327, %278 : vector<1x32xf32>
    %337 = arith.addf %335, %336 : vector<1x32xf32>
    %cst_61 = arith.constant dense<0.000000e+00> : vector<1x96xf32>
    %338 = tpu.matmul %337, %4, %cst_61 {dimension_numbers = #tpu.dot_dimension_numbers<[1], [0], [0], [1], [0, 0, 1, 1], [], []>} : vector<1x32xf32>, vector<32x96xf32>, vector<1x96xf32> -> vector<1x96xf32>
    %339 = arith.addf %338, %5 : vector<1x96xf32>
    %cst_62 = arith.constant dense<0.000000e+00> : vector<1x96xf32>
    %340 = tpu.matmul %308, %6, %cst_62 {dimension_numbers = #tpu.dot_dimension_numbers<[1], [0], [0], [1], [0, 0, 1, 1], [], []>} : vector<1x32xf32>, vector<32x96xf32>, vector<1x96xf32> -> vector<1x96xf32>
    %341 = arith.addf %340, %7 : vector<1x96xf32>
    %342 = vector.extract_strided_slice %339 {offsets = [0, 0], sizes = [1, 32], strides = [1, 1]} : vector<1x96xf32> to vector<1x32xf32>
    %343 = vector.extract_strided_slice %341 {offsets = [0, 0], sizes = [1, 32], strides = [1, 1]} : vector<1x96xf32> to vector<1x32xf32>
    %344 = arith.addf %342, %343 : vector<1x32xf32>
    %345 = arith.negf %344 : vector<1x32xf32>
    %346 = math.exp %345 : vector<1x32xf32>
    %cst_63 = arith.constant 1.000000e+00 : f32
    %347 = vector.broadcast %cst_63 : f32 to vector<1x32xf32>
    %348 = arith.addf %347, %346 : vector<1x32xf32>
    %349 = arith.divf %347, %348 : vector<1x32xf32>
    %350 = vector.extract_strided_slice %339 {offsets = [0, 32], sizes = [1, 32], strides = [1, 1]} : vector<1x96xf32> to vector<1x32xf32>
    %351 = vector.extract_strided_slice %341 {offsets = [0, 32], sizes = [1, 32], strides = [1, 1]} : vector<1x96xf32> to vector<1x32xf32>
    %352 = arith.addf %350, %351 : vector<1x32xf32>
    %353 = arith.negf %352 : vector<1x32xf32>
    %354 = math.exp %353 : vector<1x32xf32>
    %cst_64 = arith.constant 1.000000e+00 : f32
    %355 = vector.broadcast %cst_64 : f32 to vector<1x32xf32>
    %356 = arith.addf %355, %354 : vector<1x32xf32>
    %357 = arith.divf %355, %356 : vector<1x32xf32>
    %358 = vector.extract_strided_slice %339 {offsets = [0, 64], sizes = [1, 32], strides = [1, 1]} : vector<1x96xf32> to vector<1x32xf32>
    %359 = vector.extract_strided_slice %341 {offsets = [0, 64], sizes = [1, 32], strides = [1, 1]} : vector<1x96xf32> to vector<1x32xf32>
    %360 = arith.mulf %349, %359 : vector<1x32xf32>
    %361 = arith.addf %358, %360 : vector<1x32xf32>
    %362 = math.tanh %361 : vector<1x32xf32>
    %cst_65 = arith.constant 1.000000e+00 : f32
    %363 = vector.broadcast %cst_65 : f32 to vector<1x32xf32>
    %364 = arith.subf %363, %357 : vector<1x32xf32>
    %365 = arith.mulf %364, %362 : vector<1x32xf32>
    %366 = arith.mulf %357, %308 : vector<1x32xf32>
    %367 = arith.addf %365, %366 : vector<1x32xf32>
    %368 = vector.extract_strided_slice %11 {offsets = [6, 0], sizes = [1, 96], strides = [1, 1]} : vector<8x96xf32> to vector<1x96xf32>
    %cst_66 = arith.constant dense<0.000000e+00> : vector<1x96xf32>
    %369 = tpu.matmul %337, %2, %cst_66 {dimension_numbers = #tpu.dot_dimension_numbers<[1], [0], [0], [1], [0, 0, 1, 1], [], []>} : vector<1x32xf32>, vector<32x96xf32>, vector<1x96xf32> -> vector<1x96xf32>
    %370 = arith.addf %369, %3 : vector<1x96xf32>
    %371 = vector.extract_strided_slice %368 {offsets = [0, 0], sizes = [1, 32], strides = [1, 1]} : vector<1x96xf32> to vector<1x32xf32>
    %372 = vector.extract_strided_slice %370 {offsets = [0, 0], sizes = [1, 32], strides = [1, 1]} : vector<1x96xf32> to vector<1x32xf32>
    %373 = arith.addf %371, %372 : vector<1x32xf32>
    %374 = arith.negf %373 : vector<1x32xf32>
    %375 = math.exp %374 : vector<1x32xf32>
    %cst_67 = arith.constant 1.000000e+00 : f32
    %376 = vector.broadcast %cst_67 : f32 to vector<1x32xf32>
    %377 = arith.addf %376, %375 : vector<1x32xf32>
    %378 = arith.divf %376, %377 : vector<1x32xf32>
    %379 = vector.extract_strided_slice %368 {offsets = [0, 32], sizes = [1, 32], strides = [1, 1]} : vector<1x96xf32> to vector<1x32xf32>
    %380 = vector.extract_strided_slice %370 {offsets = [0, 32], sizes = [1, 32], strides = [1, 1]} : vector<1x96xf32> to vector<1x32xf32>
    %381 = arith.addf %379, %380 : vector<1x32xf32>
    %382 = arith.negf %381 : vector<1x32xf32>
    %383 = math.exp %382 : vector<1x32xf32>
    %cst_68 = arith.constant 1.000000e+00 : f32
    %384 = vector.broadcast %cst_68 : f32 to vector<1x32xf32>
    %385 = arith.addf %384, %383 : vector<1x32xf32>
    %386 = arith.divf %384, %385 : vector<1x32xf32>
    %387 = vector.extract_strided_slice %368 {offsets = [0, 64], sizes = [1, 32], strides = [1, 1]} : vector<1x96xf32> to vector<1x32xf32>
    %388 = vector.extract_strided_slice %370 {offsets = [0, 64], sizes = [1, 32], strides = [1, 1]} : vector<1x96xf32> to vector<1x32xf32>
    %389 = arith.mulf %378, %388 : vector<1x32xf32>
    %390 = arith.addf %387, %389 : vector<1x32xf32>
    %391 = math.tanh %390 : vector<1x32xf32>
    %cst_69 = arith.constant 1.000000e+00 : f32
    %392 = vector.broadcast %cst_69 : f32 to vector<1x32xf32>
    %393 = arith.subf %392, %386 : vector<1x32xf32>
    %394 = arith.mulf %393, %391 : vector<1x32xf32>
    %395 = arith.mulf %386, %337 : vector<1x32xf32>
    %396 = arith.addf %394, %395 : vector<1x32xf32>
    %cst_70 = arith.constant dense<0.000000e+00> : vector<1x96xf32>
    %397 = tpu.matmul %396, %4, %cst_70 {dimension_numbers = #tpu.dot_dimension_numbers<[1], [0], [0], [1], [0, 0, 1, 1], [], []>} : vector<1x32xf32>, vector<32x96xf32>, vector<1x96xf32> -> vector<1x96xf32>
    %398 = arith.addf %397, %5 : vector<1x96xf32>
    %cst_71 = arith.constant dense<0.000000e+00> : vector<1x96xf32>
    %399 = tpu.matmul %367, %6, %cst_71 {dimension_numbers = #tpu.dot_dimension_numbers<[1], [0], [0], [1], [0, 0, 1, 1], [], []>} : vector<1x32xf32>, vector<32x96xf32>, vector<1x96xf32> -> vector<1x96xf32>
    %400 = arith.addf %399, %7 : vector<1x96xf32>
    %401 = vector.extract_strided_slice %398 {offsets = [0, 0], sizes = [1, 32], strides = [1, 1]} : vector<1x96xf32> to vector<1x32xf32>
    %402 = vector.extract_strided_slice %400 {offsets = [0, 0], sizes = [1, 32], strides = [1, 1]} : vector<1x96xf32> to vector<1x32xf32>
    %403 = arith.addf %401, %402 : vector<1x32xf32>
    %404 = arith.negf %403 : vector<1x32xf32>
    %405 = math.exp %404 : vector<1x32xf32>
    %cst_72 = arith.constant 1.000000e+00 : f32
    %406 = vector.broadcast %cst_72 : f32 to vector<1x32xf32>
    %407 = arith.addf %406, %405 : vector<1x32xf32>
    %408 = arith.divf %406, %407 : vector<1x32xf32>
    %409 = vector.extract_strided_slice %398 {offsets = [0, 32], sizes = [1, 32], strides = [1, 1]} : vector<1x96xf32> to vector<1x32xf32>
    %410 = vector.extract_strided_slice %400 {offsets = [0, 32], sizes = [1, 32], strides = [1, 1]} : vector<1x96xf32> to vector<1x32xf32>
    %411 = arith.addf %409, %410 : vector<1x32xf32>
    %412 = arith.negf %411 : vector<1x32xf32>
    %413 = math.exp %412 : vector<1x32xf32>
    %cst_73 = arith.constant 1.000000e+00 : f32
    %414 = vector.broadcast %cst_73 : f32 to vector<1x32xf32>
    %415 = arith.addf %414, %413 : vector<1x32xf32>
    %416 = arith.divf %414, %415 : vector<1x32xf32>
    %417 = vector.extract_strided_slice %398 {offsets = [0, 64], sizes = [1, 32], strides = [1, 1]} : vector<1x96xf32> to vector<1x32xf32>
    %418 = vector.extract_strided_slice %400 {offsets = [0, 64], sizes = [1, 32], strides = [1, 1]} : vector<1x96xf32> to vector<1x32xf32>
    %419 = arith.mulf %408, %418 : vector<1x32xf32>
    %420 = arith.addf %417, %419 : vector<1x32xf32>
    %421 = math.tanh %420 : vector<1x32xf32>
    %cst_74 = arith.constant 1.000000e+00 : f32
    %422 = vector.broadcast %cst_74 : f32 to vector<1x32xf32>
    %423 = arith.subf %422, %416 : vector<1x32xf32>
    %424 = arith.mulf %423, %421 : vector<1x32xf32>
    %425 = arith.mulf %416, %367 : vector<1x32xf32>
    %426 = arith.addf %424, %425 : vector<1x32xf32>
    %427 = vector.extract_strided_slice %11 {offsets = [7, 0], sizes = [1, 96], strides = [1, 1]} : vector<8x96xf32> to vector<1x96xf32>
    %cst_75 = arith.constant dense<0.000000e+00> : vector<1x96xf32>
    %428 = tpu.matmul %396, %2, %cst_75 {dimension_numbers = #tpu.dot_dimension_numbers<[1], [0], [0], [1], [0, 0, 1, 1], [], []>} : vector<1x32xf32>, vector<32x96xf32>, vector<1x96xf32> -> vector<1x96xf32>
    %429 = arith.addf %428, %3 : vector<1x96xf32>
    %430 = vector.extract_strided_slice %427 {offsets = [0, 0], sizes = [1, 32], strides = [1, 1]} : vector<1x96xf32> to vector<1x32xf32>
    %431 = vector.extract_strided_slice %429 {offsets = [0, 0], sizes = [1, 32], strides = [1, 1]} : vector<1x96xf32> to vector<1x32xf32>
    %432 = arith.addf %430, %431 : vector<1x32xf32>
    %433 = arith.negf %432 : vector<1x32xf32>
    %434 = math.exp %433 : vector<1x32xf32>
    %cst_76 = arith.constant 1.000000e+00 : f32
    %435 = vector.broadcast %cst_76 : f32 to vector<1x32xf32>
    %436 = arith.addf %435, %434 : vector<1x32xf32>
    %437 = arith.divf %435, %436 : vector<1x32xf32>
    %438 = vector.extract_strided_slice %427 {offsets = [0, 32], sizes = [1, 32], strides = [1, 1]} : vector<1x96xf32> to vector<1x32xf32>
    %439 = vector.extract_strided_slice %429 {offsets = [0, 32], sizes = [1, 32], strides = [1, 1]} : vector<1x96xf32> to vector<1x32xf32>
    %440 = arith.addf %438, %439 : vector<1x32xf32>
    %441 = arith.negf %440 : vector<1x32xf32>
    %442 = math.exp %441 : vector<1x32xf32>
    %cst_77 = arith.constant 1.000000e+00 : f32
    %443 = vector.broadcast %cst_77 : f32 to vector<1x32xf32>
    %444 = arith.addf %443, %442 : vector<1x32xf32>
    %445 = arith.divf %443, %444 : vector<1x32xf32>
    %446 = vector.extract_strided_slice %427 {offsets = [0, 64], sizes = [1, 32], strides = [1, 1]} : vector<1x96xf32> to vector<1x32xf32>
    %447 = vector.extract_strided_slice %429 {offsets = [0, 64], sizes = [1, 32], strides = [1, 1]} : vector<1x96xf32> to vector<1x32xf32>
    %448 = arith.mulf %437, %447 : vector<1x32xf32>
    %449 = arith.addf %446, %448 : vector<1x32xf32>
    %450 = math.tanh %449 : vector<1x32xf32>
    %cst_78 = arith.constant 1.000000e+00 : f32
    %451 = vector.broadcast %cst_78 : f32 to vector<1x32xf32>
    %452 = arith.subf %451, %445 : vector<1x32xf32>
    %453 = arith.mulf %452, %450 : vector<1x32xf32>
    %454 = arith.mulf %445, %396 : vector<1x32xf32>
    %455 = arith.addf %453, %454 : vector<1x32xf32>
    %cst_79 = arith.constant dense<0.000000e+00> : vector<1x96xf32>
    %456 = tpu.matmul %455, %4, %cst_79 {dimension_numbers = #tpu.dot_dimension_numbers<[1], [0], [0], [1], [0, 0, 1, 1], [], []>} : vector<1x32xf32>, vector<32x96xf32>, vector<1x96xf32> -> vector<1x96xf32>
    %457 = arith.addf %456, %5 : vector<1x96xf32>
    %cst_80 = arith.constant dense<0.000000e+00> : vector<1x96xf32>
    %458 = tpu.matmul %426, %6, %cst_80 {dimension_numbers = #tpu.dot_dimension_numbers<[1], [0], [0], [1], [0, 0, 1, 1], [], []>} : vector<1x32xf32>, vector<32x96xf32>, vector<1x96xf32> -> vector<1x96xf32>
    %459 = arith.addf %458, %7 : vector<1x96xf32>
    %460 = vector.extract_strided_slice %457 {offsets = [0, 0], sizes = [1, 32], strides = [1, 1]} : vector<1x96xf32> to vector<1x32xf32>
    %461 = vector.extract_strided_slice %459 {offsets = [0, 0], sizes = [1, 32], strides = [1, 1]} : vector<1x96xf32> to vector<1x32xf32>
    %462 = arith.addf %460, %461 : vector<1x32xf32>
    %463 = arith.negf %462 : vector<1x32xf32>
    %464 = math.exp %463 : vector<1x32xf32>
    %cst_81 = arith.constant 1.000000e+00 : f32
    %465 = vector.broadcast %cst_81 : f32 to vector<1x32xf32>
    %466 = arith.addf %465, %464 : vector<1x32xf32>
    %467 = arith.divf %465, %466 : vector<1x32xf32>
    %468 = vector.extract_strided_slice %457 {offsets = [0, 32], sizes = [1, 32], strides = [1, 1]} : vector<1x96xf32> to vector<1x32xf32>
    %469 = vector.extract_strided_slice %459 {offsets = [0, 32], sizes = [1, 32], strides = [1, 1]} : vector<1x96xf32> to vector<1x32xf32>
    %470 = arith.addf %468, %469 : vector<1x32xf32>
    %471 = arith.negf %470 : vector<1x32xf32>
    %472 = math.exp %471 : vector<1x32xf32>
    %cst_82 = arith.constant 1.000000e+00 : f32
    %473 = vector.broadcast %cst_82 : f32 to vector<1x32xf32>
    %474 = arith.addf %473, %472 : vector<1x32xf32>
    %475 = arith.divf %473, %474 : vector<1x32xf32>
    %476 = vector.extract_strided_slice %457 {offsets = [0, 64], sizes = [1, 32], strides = [1, 1]} : vector<1x96xf32> to vector<1x32xf32>
    %477 = vector.extract_strided_slice %459 {offsets = [0, 64], sizes = [1, 32], strides = [1, 1]} : vector<1x96xf32> to vector<1x32xf32>
    %478 = arith.mulf %467, %477 : vector<1x32xf32>
    %479 = arith.addf %476, %478 : vector<1x32xf32>
    %480 = math.tanh %479 : vector<1x32xf32>
    %cst_83 = arith.constant 1.000000e+00 : f32
    %481 = vector.broadcast %cst_83 : f32 to vector<1x32xf32>
    %482 = arith.subf %481, %475 : vector<1x32xf32>
    %483 = arith.mulf %482, %480 : vector<1x32xf32>
    %484 = arith.mulf %475, %426 : vector<1x32xf32>
    %485 = arith.addf %483, %484 : vector<1x32xf32>
    %486 = tpu.concatenate %72, %131, %190, %249, %308, %367, %426, %485 in 0 : vector<1x32xf32>, vector<1x32xf32>, vector<1x32xf32>, vector<1x32xf32>, vector<1x32xf32>, vector<1x32xf32>, vector<1x32xf32>, vector<1x32xf32> -> vector<8x32xf32>
    %cst_84 = arith.constant 0.000000e+00 : f32
    %487 = vector.broadcast %cst_84 : f32 to vector<8x32xf32>
    %488 = arith.maximumf %486, %487 : vector<8x32xf32>
    %c136 = arith.constant 136 : index
    %c0_85 = arith.constant 0 : index
    %489 = vector.load %arg1[%c136, %c0_85] : memref<152x96xf32, #tpu.memory_space<vmem>>, vector<1x96xf32>
    %490 = vector.extract_strided_slice %489 {offsets = [0, 0], sizes = [1, 32], strides = [1, 1]} : vector<1x96xf32> to vector<1x32xf32>
    %c144 = arith.constant 144 : index
    %c0_86 = arith.constant 0 : index
    %491 = vector.load %arg1[%c144, %c0_86] : memref<152x96xf32, #tpu.memory_space<vmem>>, vector<1x1xf32>
    %492 = vector.broadcast %490 : vector<1x32xf32> to vector<8x32xf32>
    %493 = arith.mulf %488, %492 : vector<8x32xf32>
    %cst_87 = arith.constant dense<0.000000e+00> : vector<8xf32>
    %494 = vector.multi_reduction <add>, %493, %cst_87 [1] : vector<8x32xf32> to vector<8xf32>
    %495 = vector.shape_cast %494 : vector<8xf32> to vector<8x1xf32>
    %496 = vector.broadcast %491 : vector<1x1xf32> to vector<8x1xf32>
    %497 = arith.addf %495, %496 : vector<8x1xf32>
    %c0_88 = arith.constant 0 : index
    %c0_89 = arith.constant 0 : index
    %498 = vector.load %arg2[%c0_88, %c0_89] : memref<8x1xf32, #tpu.memory_space<vmem>>, vector<8x1xf32>
    tpu.vector_store %arg2[%c0_88, %c0_89], %497 {strides = array<i32>} : memref<8x1xf32, #tpu.memory_space<vmem>>, vector<8x1xf32>,
    return
  }
}

</mosaic_0001>

<llo_original>
// kernel: tpu_custom_call.1
$region0: #{tpu_custom_call.1}
  #allocation0 [shape = 'u32[]', space=smem, size = 0x4, offset = 0x4, fixed_abs, tag = 'smem constant byte address 0x4 - core index']
  #allocation1 [shape = 'u32[144,128]{1,0:T(1,128)}', space=vmem, size = 0x12000, scoped, tag = 'internal scratch']
  %s0 = inlined_call_operand.vmem [shape: f32[8,4], index: 0, kind: input, shape index: {}]
  %s1 = inlined_call_operand.hbm [shape: f32[152,96], index: 1, kind: input, shape index: {}]
  %s2 = inlined_call_operand.vmem [shape: f32[8,1], index: 2, kind: output, shape index: {}]
  %s3 = sld [smem:[#allocation0]]
  $region22: #{tpu_custom_call.1} parent=0
    _
  %s5 = ssub.s32 1, %s3
  %s6 = scalar_select 0, %s5, %s3
  $region1: #{tpu_custom_call.1} parent=0
    #allocation2 [shape = 'u8[77824]{0}', space=vmem, size = 0x13000, scoped, tag = 'input window, operand 1, single buffered']
    #allocation3 [shape = 's32[1]{0}', space=sflag, size = 0x4, scoped, tag = 'scoped memory for tpu_custom_call.1']
    %7 = vsyncpa [#allocation3], 0
    // Predicated region
    $region2: #{tpu_custom_call.1} parent=1 // pred_check
      _
    $region3: #{tpu_custom_call.1} parent=1 // pred_check_branch
      %9 = sbr.rel (0) target = $region5
    $region4: #{tpu_custom_call.1} parent=1 // pred_region
      _
    $region5: #{tpu_custom_call.1} parent=1 // pred_fallthru
      _
    // Predicated region
    $region6: #{tpu_custom_call.1} parent=1 // pred_check
      _
    $region7: #{tpu_custom_call.1} parent=1 // pred_check_branch
      %11 = sbr.rel (0) target = $region9
    $region8: #{tpu_custom_call.1} parent=1 // pred_region
      %s13 = ssub.s32 2432, 2432
      %14 = vsyncadd [#allocation3], %s13
      %s15 = sshll.u32 [#allocation2], 4
      %s16 = int_to_ptr.vmem [resolvable:$true] %s15
      %21 = dma.hbm_to_vmem [thread:$0]  %s1, 2432, %s16, [#allocation3], 128, 128, 8
    $region9: #{tpu_custom_call.1} parent=1 // pred_fallthru
      _
    // Predicated region
    $region10: #{tpu_custom_call.1} parent=1 // pred_check
      _
    $region11: #{tpu_custom_call.1} parent=1 // pred_check_branch
      %23 = sbr.rel (0) target = $region13
    $region12: #{tpu_custom_call.1} parent=1 // pred_region
      %24 = dma.done [#allocation3], 2432
    $region13: #{tpu_custom_call.1} parent=1 // pred_fallthru
      _
    %v25 = vld [vmem:[#allocation2] sm:$0xf]
    %v26 = vld [vmem:[#allocation2 + $0x8] sm:$0x1]
    %v27 = vld [vmem:[#allocation2 + $0x10] sm:$0xff]
    %v28 = vld [vmem:[#allocation2 + $0x18] sm:$0xff]
    %v29 = vld [vmem:[#allocation2 + $0x20] sm:$0xff]
    %v30 = vld [vmem:[#allocation2 + $0x28] sm:$0xff]
    %v31 = vld [vmem:[#allocation2 + $0x30] sm:$0x1]
    %v32 = vld [vmem:[#allocation2 + $0x38] sm:$0xff]
    %v33 = vld [vmem:[#allocation2 + $0x40] sm:$0xff]
    %v34 = vld [vmem:[#allocation2 + $0x48] sm:$0xff]
    %v35 = vld [vmem:[#allocation2 + $0x50] sm:$0xff]
    %v36 = vld [vmem:[#allocation2 + $0x58] sm:$0x1]
    %v37 = vld [vmem:[#allocation2 + $0x60] sm:$0xff]
    %v38 = vld [vmem:[#allocation2 + $0x68] sm:$0xff]
    %v39 = vld [vmem:[#allocation2 + $0x70] sm:$0xff]
    %v40 = vld [vmem:[#allocation2 + $0x78] sm:$0xff]
    %v41 = vld [vmem:[#allocation2 + $0x80] sm:$0x1]
    %v42 = vld [vmem:[%s0] sm:$0xff]
    %v43 = vlaneseq
    %v44 = vshrl.u32 %v43, 7
    %v45 = vsub.s32 0, %v44
    %v46 = vrot.slane %v26, %v45
    %vm47 = vcmask 31744
    %v49 = vsel %vm47, %v42, 0
    %vm51 = vcmask 1043456
    %v53 = vsel %vm51, %v25, 0
    %55 = vmatprep.subr.mxu0 0.0
    %56 = vmatpush1.msra.mxu0 0.0
    %57 = vmatprep.subr.mxu0 0.0
    %58 = vmatpush1.msra.mxu0 0.0
    %59 = vmatprep.subr.mxu0 0.0
    %60 = vmatpush1.msra.mxu0 0.0
    %61 = vmatprep.subr.mxu0 0.0
    %62 = vmatpush1.msra.mxu0 0.0
    %63 = vmatprep.subr.mxu0 0.0
    %64 = vmatpush1.msra.mxu0 0.0
    %65 = vmatprep.subr.mxu0 0.0
    %66 = vmatpush1.msra.mxu0 0.0
    %67 = vmatprep.subr.mxu0 0.0
    %68 = vmatpush1.msra.mxu0 0.0
    %69 = vmatprep.subr.mxu0 0.0
    %70 = vmatpush1.msra.mxu0 0.0
    %71 = vmatprep.subr.mxu0 0.0
    %72 = vmatpush1.msra.mxu0 0.0
    %73 = vmatprep.subr.mxu0 0.0
    %74 = vmatpush1.msra.mxu0 0.0
    %75 = vmatprep.subr.mxu0 0.0
    %76 = vmatpush1.msra.mxu0 0.0
    %77 = vmatprep.subr.mxu0 0.0
    %78 = vmatpush1.msra.mxu0 0.0
    %79 = vmatprep.subr.mxu0 0.0
    %80 = vmatpush1.msra.mxu0 0.0
    %81 = vmatprep.subr.mxu0 0.0
    %82 = vmatpush1.msra.mxu0 0.0
    %83 = vmatprep.subr.mxu0 0.0
    %84 = vmatpush1.msra.mxu0 0.0
    %85 = vmatprep.subr.mxu0 0.0
    %86 = vmatpush1.msra.mxu0 %v53
    %87 = vmatprep.subr.mxu0 0.0
    %88 = vmatpush2.msra.mxu0 0.0
    %89 = vmatprep.subr.mxu0 0.0
    %90 = vmatpush2.msra.mxu0 0.0
    %91 = vmatprep.subr.mxu0 0.0
    %92 = vmatpush2.msra.mxu0 0.0
    %93 = vmatprep.subr.mxu0 0.0
    %94 = vmatpush2.msra.mxu0 0.0
    %95 = vmatprep.subr.mxu0 0.0
    %96 = vmatpush2.msra.mxu0 0.0
    %97 = vmatprep.subr.mxu0 0.0
    %98 = vmatpush2.msra.mxu0 0.0
    %99 = vmatprep.subr.mxu0 0.0
    %100 = vmatpush2.msra.mxu0 0.0
    %101 = vmatprep.subr.mxu0 0.0
    %102 = vmatpush2.msra.mxu0 0.0
    %103 = vmatprep.subr.mxu0 0.0
    %104 = vmatpush2.msra.mxu0 0.0
    %105 = vmatprep.subr.mxu0 0.0
    %106 = vmatpush2.msra.mxu0 0.0
    %107 = vmatprep.subr.mxu0 0.0
    %108 = vmatpush2.msra.mxu0 0.0
    %109 = vmatprep.subr.mxu0 0.0
    %110 = vmatpush2.msra.mxu0 0.0
    %111 = vmatprep.subr.mxu0 0.0
    %112 = vmatpush2.msra.mxu0 0.0
    %113 = vmatprep.subr.mxu0 0.0
    %114 = vmatpush2.msra.mxu0 0.0
    %115 = vmatprep.subr.mxu0 0.0
    %116 = vmatpush2.msra.mxu0 0.0
    %117 = vmatprep.subr.mxu0 0.0
    %118 = vmatpush2.msra.mxu0 0.0
    %119 = vmatprep.mubr.f32.mxu0 0.0
    %120 = vmatmul.mubr.f32.gmra.mxu0 %v49
    %v121 = vpop.f32.mrf.mxu0
    %v122 = vadd.f32 %v46, %v121
    %v123 = vpop.f32.mrf.mxu0
    %124 = vdwg.mxu0
    %vm125 = vcmask 261120
    %v127 = vsel %vm125, 0.0, 0
    %129 = vmatprep.subr.mxu0 0.0
    %130 = vmatpush1.msra.mxu0 0.0
    %131 = vmatprep.subr.mxu0 0.0
    %132 = vmatpush1.msra.mxu0 0.0
    %133 = vmatprep.subr.mxu0 0.0
    %134 = vmatpush1.msra.mxu0 0.0
    %135 = vmatprep.subr.mxu0 0.0
    %136 = vmatpush1.msra.mxu0 0.0
    %137 = vmatprep.subr.mxu0 0.0
    %138 = vmatpush1.msra.mxu0 0.0
    %139 = vmatprep.subr.mxu0 0.0
    %140 = vmatpush1.msra.mxu0 0.0
    %141 = vmatprep.subr.mxu0 0.0
    %142 = vmatpush1.msra.mxu0 0.0
    %143 = vmatprep.subr.mxu0 0.0
    %144 = vmatpush1.msra.mxu0 0.0
    %145 = vmatprep.subr.mxu0 0.0
    %146 = vmatpush1.msra.mxu0 0.0
    %147 = vmatprep.subr.mxu0 0.0
    %148 = vmatpush1.msra.mxu0 0.0
    %149 = vmatprep.subr.mxu0 0.0
    %150 = vmatpush1.msra.mxu0 0.0
    %151 = vmatprep.subr.mxu0 0.0
    %152 = vmatpush1.msra.mxu0 0.0
    %153 = vmatprep.subr.mxu0 0.0
    %154 = vmatpush1.msra.mxu0 %v30
    %155 = vmatprep.subr.mxu0 0.0
    %156 = vmatpush1.msra.mxu0 %v29
    %157 = vmatprep.subr.mxu0 0.0
    %158 = vmatpush1.msra.mxu0 %v28
    %159 = vmatprep.subr.mxu0 0.0
    %160 = vmatpush1.msra.mxu0 %v27
    %161 = vmatprep.subr.mxu0 0.0
    %162 = vmatpush2.msra.mxu0 0.0
    %163 = vmatprep.subr.mxu0 0.0
    %164 = vmatpush2.msra.mxu0 0.0
    %165 = vmatprep.subr.mxu0 0.0
    %166 = vmatpush2.msra.mxu0 0.0
    %167 = vmatprep.subr.mxu0 0.0
    %168 = vmatpush2.msra.mxu0 0.0
    %169 = vmatprep.subr.mxu0 0.0
    %170 = vmatpush2.msra.mxu0 0.0
    %171 = vmatprep.subr.mxu0 0.0
    %172 = vmatpush2.msra.mxu0 0.0
    %173 = vmatprep.subr.mxu0 0.0
    %174 = vmatpush2.msra.mxu0 0.0
    %175 = vmatprep.subr.mxu0 0.0
    %176 = vmatpush2.msra.mxu0 0.0
    %177 = vmatprep.subr.mxu0 0.0
    %178 = vmatpush2.msra.mxu0 0.0
    %179 = vmatprep.subr.mxu0 0.0
    %180 = vmatpush2.msra.mxu0 0.0
    %181 = vmatprep.subr.mxu0 0.0
    %182 = vmatpush2.msra.mxu0 0.0
    %183 = vmatprep.subr.mxu0 0.0
    %184 = vmatpush2.msra.mxu0 0.0
    %185 = vmatprep.subr.mxu0 0.0
    %186 = vmatpush2.msra.mxu0 0.0
    %187 = vmatprep.subr.mxu0 0.0
    %188 = vmatpush2.msra.mxu0 0.0
    %189 = vmatprep.subr.mxu0 0.0
    %190 = vmatpush2.msra.mxu0 0.0
    %191 = vmatprep.subr.mxu0 0.0
    %192 = vmatpush2.msra.mxu0 0.0
    %193 = vmatprep.mubr.f32.mxu0 0.0
    %194 = vmatmul.mubr.f32.gmra.mxu0 %v127
    %v195 = vpop.f32.mrf.mxu0
    %v196 = vadd.f32 %v31, %v195
    %v197 = vpop.f32.mrf.mxu0
    %198 = vdwg.mxu0
    %v199 = vadd.f32 %v122, %v196
    %v200 = vxor.u32 %v199, 2147483648
    %v201 = vmul.f32 %v200, 1.442695
    %v202 = vpow.pop %v201
    %v203 = vadd.f32 %v202, 1.0
    %v204 = vrcp.pop %v203
    %v205 = vmul.f32 1.0, %v204
    %207 = vrot.lane.b32.xlu0 %v196, 64
    %v208 = vpop.permute.xlu0 %207
    %v210 = vmul.f32 %v205, %v208
    %212 = vrot.lane.b32.xlu0 %v210, 64
    %v213 = vpop.permute.xlu0 %212
    %v215 = vadd.f32 %v122, %v213
    %v216 = vtanh.pop %v215
    %v217 = vsub.f32 1.0, %v205
    %219 = vrot.lane.b32.xlu0 %v216, 96
    %v220 = vpop.permute.xlu0 %219
    %v222 = vmul.f32 %v217, %v220
    %v223 = vmul.f32 %v205, 0.0
    %v224 = vadd.f32 %v222, %v223
    %226 = vrot.lane.b32.xlu0 %v224, 96
    %v227 = vpop.permute.xlu0 %226
    %v228 = vsel %vm125, %v227, 0
    %230 = vmatprep.subr.mxu0 0.0
    %231 = vmatpush1.msra.mxu0 0.0
    %232 = vmatprep.subr.mxu0 0.0
    %233 = vmatpush1.msra.mxu0 0.0
    %234 = vmatprep.subr.mxu0 0.0
    %235 = vmatpush1.msra.mxu0 0.0
    %236 = vmatprep.subr.mxu0 0.0
    %237 = vmatpush1.msra.mxu0 0.0
    %238 = vmatprep.subr.mxu0 0.0
    %239 = vmatpush1.msra.mxu0 0.0
    %240 = vmatprep.subr.mxu0 0.0
    %241 = vmatpush1.msra.mxu0 0.0
    %242 = vmatprep.subr.mxu0 0.0
    %243 = vmatpush1.msra.mxu0 0.0
    %244 = vmatprep.subr.mxu0 0.0
    %245 = vmatpush1.msra.mxu0 0.0
    %246 = vmatprep.subr.mxu0 0.0
    %247 = vmatpush1.msra.mxu0 0.0
    %248 = vmatprep.subr.mxu0 0.0
    %249 = vmatpush1.msra.mxu0 0.0
    %250 = vmatprep.subr.mxu0 0.0
    %251 = vmatpush1.msra.mxu0 0.0
    %252 = vmatprep.subr.mxu0 0.0
    %253 = vmatpush1.msra.mxu0 0.0
    %254 = vmatprep.subr.mxu0 0.0
    %255 = vmatpush1.msra.mxu0 %v35
    %256 = vmatprep.subr.mxu0 0.0
    %257 = vmatpush1.msra.mxu0 %v34
    %258 = vmatprep.subr.mxu0 0.0
    %259 = vmatpush1.msra.mxu0 %v33
    %260 = vmatprep.subr.mxu0 0.0
    %261 = vmatpush1.msra.mxu0 %v32
    %262 = vmatprep.subr.mxu0 0.0
    %263 = vmatpush2.msra.mxu0 0.0
    %264 = vmatprep.subr.mxu0 0.0
    %265 = vmatpush2.msra.mxu0 0.0
    %266 = vmatprep.subr.mxu0 0.0
    %267 = vmatpush2.msra.mxu0 0.0
    %268 = vmatprep.subr.mxu0 0.0
    %269 = vmatpush2.msra.mxu0 0.0
    %270 = vmatprep.subr.mxu0 0.0
    %271 = vmatpush2.msra.mxu0 0.0
    %272 = vmatprep.subr.mxu0 0.0
    %273 = vmatpush2.msra.mxu0 0.0
    %274 = vmatprep.subr.mxu0 0.0
    %275 = vmatpush2.msra.mxu0 0.0
    %276 = vmatprep.subr.mxu0 0.0
    %277 = vmatpush2.msra.mxu0 0.0
    %278 = vmatprep.subr.mxu0 0.0
    %279 = vmatpush2.msra.mxu0 0.0
    %280 = vmatprep.subr.mxu0 0.0
    %281 = vmatpush2.msra.mxu0 0.0
    %282 = vmatprep.subr.mxu0 0.0
    %283 = vmatpush2.msra.mxu0 0.0
    %284 = vmatprep.subr.mxu0 0.0
    %285 = vmatpush2.msra.mxu0 0.0
    %286 = vmatprep.subr.mxu0 0.0
    %287 = vmatpush2.msra.mxu0 0.0
    %288 = vmatprep.subr.mxu0 0.0
    %289 = vmatpush2.msra.mxu0 0.0
    %290 = vmatprep.subr.mxu0 0.0
    %291 = vmatpush2.msra.mxu0 0.0
    %292 = vmatprep.subr.mxu0 0.0
    %293 = vmatpush2.msra.mxu0 0.0
    %294 = vmatprep.mubr.f32.mxu0 0.0
    %295 = vmatmul.mubr.f32.gmra.mxu0 %v228
    %v296 = vpop.f32.mrf.mxu0
    %v297 = vadd.f32 %v36, %v296
    %v298 = vpop.f32.mrf.mxu0
    %299 = vdwg.mxu0
    %300 = vmatprep.subr.mxu0 0.0
    %301 = vmatpush1.msra.mxu0 0.0
    %302 = vmatprep.subr.mxu0 0.0
    %303 = vmatpush1.msra.mxu0 0.0
    %304 = vmatprep.subr.mxu0 0.0
    %305 = vmatpush1.msra.mxu0 0.0
    %306 = vmatprep.subr.mxu0 0.0
    %307 = vmatpush1.msra.mxu0 0.0
    %308 = vmatprep.subr.mxu0 0.0
    %309 = vmatpush1.msra.mxu0 0.0
    %310 = vmatprep.subr.mxu0 0.0
    %311 = vmatpush1.msra.mxu0 0.0
    %312 = vmatprep.subr.mxu0 0.0
    %313 = vmatpush1.msra.mxu0 0.0
    %314 = vmatprep.subr.mxu0 0.0
    %315 = vmatpush1.msra.mxu0 0.0
    %316 = vmatprep.subr.mxu0 0.0
    %317 = vmatpush1.msra.mxu0 0.0
    %318 = vmatprep.subr.mxu0 0.0
    %319 = vmatpush1.msra.mxu0 0.0
    %320 = vmatprep.subr.mxu0 0.0
    %321 = vmatpush1.msra.mxu0 0.0
    %322 = vmatprep.subr.mxu0 0.0
    %323 = vmatpush1.msra.mxu0 0.0
    %324 = vmatprep.subr.mxu0 0.0
    %325 = vmatpush1.msra.mxu0 %v40
    %326 = vmatprep.subr.mxu0 0.0
    %327 = vmatpush1.msra.mxu0 %v39
    %328 = vmatprep.subr.mxu0 0.0
    %329 = vmatpush1.msra.mxu0 %v38
    %330 = vmatprep.subr.mxu0 0.0
    %331 = vmatpush1.msra.mxu0 %v37
    %332 = vmatprep.subr.mxu0 0.0
    %333 = vmatpush2.msra.mxu0 0.0
    %334 = vmatprep.subr.mxu0 0.0
    %335 = vmatpush2.msra.mxu0 0.0
    %336 = vmatprep.subr.mxu0 0.0
    %337 = vmatpush2.msra.mxu0 0.0
    %338 = vmatprep.subr.mxu0 0.0
    %339 = vmatpush2.msra.mxu0 0.0
    %340 = vmatprep.subr.mxu0 0.0
    %341 = vmatpush2.msra.mxu0 0.0
    %342 = vmatprep.subr.mxu0 0.0
    %343 = vmatpush2.msra.mxu0 0.0
    %344 = vmatprep.subr.mxu0 0.0
    %345 = vmatpush2.msra.mxu0 0.0
    %346 = vmatprep.subr.mxu0 0.0
    %347 = vmatpush2.msra.mxu0 0.0
    %348 = vmatprep.subr.mxu0 0.0
    %349 = vmatpush2.msra.mxu0 0.0
    %350 = vmatprep.subr.mxu0 0.0
    %351 = vmatpush2.msra.mxu0 0.0
    %352 = vmatprep.subr.mxu0 0.0
    %353 = vmatpush2.msra.mxu0 0.0
    %354 = vmatprep.subr.mxu0 0.0
    %355 = vmatpush2.msra.mxu0 0.0
    %356 = vmatprep.subr.mxu0 0.0
    %357 = vmatpush2.msra.mxu0 0.0
    %358 = vmatprep.subr.mxu0 0.0
    %359 = vmatpush2.msra.mxu0 0.0
    %360 = vmatprep.subr.mxu0 0.0
    %361 = vmatpush2.msra.mxu0 0.0
    %362 = vmatprep.subr.mxu0 0.0
    %363 = vmatpush2.msra.mxu0 0.0
    %364 = vmatprep.mubr.f32.mxu0 0.0
    %365 = vmatmul.mubr.f32.gmra.mxu0 %v127
    %v366 = vpop.f32.mrf.mxu0
    %v367 = vadd.f32 %v41, %v366
    %v368 = vpop.f32.mrf.mxu0
    %369 = vdwg.mxu0
    %v370 = vadd.f32 %v297, %v367
    %v371 = vxor.u32 %v370, 2147483648
    %v372 = vmul.f32 %v371, 1.442695
    %v373 = vpow.pop %v372
    %v374 = vadd.f32 %v373, 1.0
    %v375 = vrcp.pop %v374
    %v376 = vmul.f32 1.0, %v375
    %378 = vrot.lane.b32.xlu0 %v367, 64
    %v379 = vpop.permute.xlu0 %378
    %v381 = vmul.f32 %v376, %v379
    %383 = vrot.lane.b32.xlu0 %v381, 64
    %v384 = vpop.permute.xlu0 %383
    %v386 = vadd.f32 %v297, %v384
    %v387 = vtanh.pop %v386
    %v388 = vsub.f32 1.0, %v376
    %390 = vrot.lane.b32.xlu0 %v387, 96
    %v391 = vpop.permute.xlu0 %390
    %v393 = vmul.f32 %v388, %v391
    %v394 = vmul.f32 %v376, 0.0
    %v395 = vadd.f32 %v393, %v394
    %396 = vmatprep.subr.mxu0 0.0
    %397 = vmatpush1.msra.mxu0 0.0
    %398 = vmatprep.subr.mxu0 0.0
    %399 = vmatpush1.msra.mxu0 0.0
    %400 = vmatprep.subr.mxu0 0.0
    %401 = vmatpush1.msra.mxu0 0.0
    %402 = vmatprep.subr.mxu0 0.0
    %403 = vmatpush1.msra.mxu0 0.0
    %404 = vmatprep.subr.mxu0 0.0
    %405 = vmatpush1.msra.mxu0 0.0
    %406 = vmatprep.subr.mxu0 0.0
    %407 = vmatpush1.msra.mxu0 0.0
    %408 = vmatprep.subr.mxu0 0.0
    %409 = vmatpush1.msra.mxu0 0.0
    %410 = vmatprep.subr.mxu0 0.0
    %411 = vmatpush1.msra.mxu0 0.0
    %412 = vmatprep.subr.mxu0 0.0
    %413 = vmatpush1.msra.mxu0 0.0
    %414 = vmatprep.subr.mxu0 0.0
    %415 = vmatpush1.msra.mxu0 0.0
    %416 = vmatprep.subr.mxu0 0.0
    %417 = vmatpush1.msra.mxu0 0.0
    %418 = vmatprep.subr.mxu0 0.0
    %419 = vmatpush1.msra.mxu0 0.0
    %420 = vmatprep.subr.mxu0 0.0
    %421 = vmatpush1.msra.mxu0 %v30
    %422 = vmatprep.subr.mxu0 0.0
    %423 = vmatpush1.msra.mxu0 %v29
    %424 = vmatprep.subr.mxu0 0.0
    %425 = vmatpush1.msra.mxu0 %v28
    %426 = vmatprep.subr.mxu0 0.0
    %427 = vmatpush1.msra.mxu0 %v27
    %428 = vmatprep.subr.mxu0 0.0
    %429 = vmatpush2.msra.mxu0 0.0
    %430 = vmatprep.subr.mxu0 0.0
    %431 = vmatpush2.msra.mxu0 0.0
    %432 = vmatprep.subr.mxu0 0.0
    %433 = vmatpush2.msra.mxu0 0.0
    %434 = vmatprep.subr.mxu0 0.0
    %435 = vmatpush2.msra.mxu0 0.0
    %436 = vmatprep.subr.mxu0 0.0
    %437 = vmatpush2.msra.mxu0 0.0
    %438 = vmatprep.subr.mxu0 0.0
    %439 = vmatpush2.msra.mxu0 0.0
    %440 = vmatprep.subr.mxu0 0.0
    %441 = vmatpush2.msra.mxu0 0.0
    %442 = vmatprep.subr.mxu0 0.0
    %443 = vmatpush2.msra.mxu0 0.0
    %444 = vmatprep.subr.mxu0 0.0
    %445 = vmatpush2.msra.mxu0 0.0
    %446 = vmatprep.subr.mxu0 0.0
    %447 = vmatpush2.msra.mxu0 0.0
    %448 = vmatprep.subr.mxu0 0.0
    %449 = vmatpush2.msra.mxu0 0.0
    %450 = vmatprep.subr.mxu0 0.0
    %451 = vmatpush2.msra.mxu0 0.0
    %452 = vmatprep.subr.mxu0 0.0
    %453 = vmatpush2.msra.mxu0 0.0
    %454 = vmatprep.subr.mxu0 0.0
    %455 = vmatpush2.msra.mxu0 0.0
    %456 = vmatprep.subr.mxu0 0.0
    %457 = vmatpush2.msra.mxu0 0.0
    %458 = vmatprep.subr.mxu0 0.0
    %459 = vmatpush2.msra.mxu0 0.0
    %460 = vmatprep.mubr.f32.mxu0 0.0
    %461 = vmatmul.mubr.f32.gmra.mxu0 %v228
    %v462 = vpop.f32.mrf.mxu0
    %v463 = vadd.f32 %v31, %v462
    %v464 = vpop.f32.mrf.mxu0
    %465 = vdwg.mxu0
    %v467 = vrot.slane %v463, 7
    %v469 = vadd.f32 %v122, %v467
    %v470 = vxor.u32 %v469, 2147483648
    %v471 = vmul.f32 %v470, 1.442695
    %v472 = vpow.pop %v471
    %v473 = vadd.f32 %v472, 1.0
    %v474 = vrcp.pop %v473
    %v475 = vmul.f32 1.0, %v474
    %476 = vrot.lane.b32.xlu0 %v467, 64
    %v477 = vpop.permute.xlu0 %476
    %v479 = vmul.f32 %v475, %v477
    %481 = vrot.lane.b32.xlu0 %v479, 64
    %v482 = vpop.permute.xlu0 %481
    %v484 = vadd.f32 %v122, %v482
    %v485 = vtanh.pop %v484
    %v486 = vsub.f32 1.0, %v475
    %488 = vrot.lane.b32.xlu0 %v485, 96
    %v489 = vpop.permute.xlu0 %488
    %v491 = vmul.f32 %v486, %v489
    %v492 = vrot.slane %v224, 7
    %v494 = vmul.f32 %v475, %v492
    %v495 = vadd.f32 %v491, %v494
    %v497 = vrot.slane %v495, 1
    %498 = vrot.lane.b32.xlu0 %v497, 96
    %v499 = vpop.permute.xlu0 %498
    %v500 = vsel %vm125, %v499, 0
    %502 = vmatprep.subr.mxu0 0.0
    %503 = vmatpush1.msra.mxu0 0.0
    %504 = vmatprep.subr.mxu0 0.0
    %505 = vmatpush1.msra.mxu0 0.0
    %506 = vmatprep.subr.mxu0 0.0
    %507 = vmatpush1.msra.mxu0 0.0
    %508 = vmatprep.subr.mxu0 0.0
    %509 = vmatpush1.msra.mxu0 0.0
    %510 = vmatprep.subr.mxu0 0.0
    %511 = vmatpush1.msra.mxu0 0.0
    %512 = vmatprep.subr.mxu0 0.0
    %513 = vmatpush1.msra.mxu0 0.0
    %514 = vmatprep.subr.mxu0 0.0
    %515 = vmatpush1.msra.mxu0 0.0
    %516 = vmatprep.subr.mxu0 0.0
    %517 = vmatpush1.msra.mxu0 0.0
    %518 = vmatprep.subr.mxu0 0.0
    %519 = vmatpush1.msra.mxu0 0.0
    %520 = vmatprep.subr.mxu0 0.0
    %521 = vmatpush1.msra.mxu0 0.0
    %522 = vmatprep.subr.mxu0 0.0
    %523 = vmatpush1.msra.mxu0 0.0
    %524 = vmatprep.subr.mxu0 0.0
    %525 = vmatpush1.msra.mxu0 0.0
    %526 = vmatprep.subr.mxu0 0.0
    %527 = vmatpush1.msra.mxu0 %v35
    %528 = vmatprep.subr.mxu0 0.0
    %529 = vmatpush1.msra.mxu0 %v34
    %530 = vmatprep.subr.mxu0 0.0
    %531 = vmatpush1.msra.mxu0 %v33
    %532 = vmatprep.subr.mxu0 0.0
    %533 = vmatpush1.msra.mxu0 %v32
    %534 = vmatprep.subr.mxu0 0.0
    %535 = vmatpush2.msra.mxu0 0.0
    %536 = vmatprep.subr.mxu0 0.0
    %537 = vmatpush2.msra.mxu0 0.0
    %538 = vmatprep.subr.mxu0 0.0
    %539 = vmatpush2.msra.mxu0 0.0
    %540 = vmatprep.subr.mxu0 0.0
    %541 = vmatpush2.msra.mxu0 0.0
    %542 = vmatprep.subr.mxu0 0.0
    %543 = vmatpush2.msra.mxu0 0.0
    %544 = vmatprep.subr.mxu0 0.0
    %545 = vmatpush2.msra.mxu0 0.0
    %546 = vmatprep.subr.mxu0 0.0
    %547 = vmatpush2.msra.mxu0 0.0
    %548 = vmatprep.subr.mxu0 0.0
    %549 = vmatpush2.msra.mxu0 0.0
    %550 = vmatprep.subr.mxu0 0.0
    %551 = vmatpush2.msra.mxu0 0.0
    %552 = vmatprep.subr.mxu0 0.0
    %553 = vmatpush2.msra.mxu0 0.0
    %554 = vmatprep.subr.mxu0 0.0
    %555 = vmatpush2.msra.mxu0 0.0
    %556 = vmatprep.subr.mxu0 0.0
    %557 = vmatpush2.msra.mxu0 0.0
    %558 = vmatprep.subr.mxu0 0.0
    %559 = vmatpush2.msra.mxu0 0.0
    %560 = vmatprep.subr.mxu0 0.0
    %561 = vmatpush2.msra.mxu0 0.0
    %562 = vmatprep.subr.mxu0 0.0
    %563 = vmatpush2.msra.mxu0 0.0
    %564 = vmatprep.subr.mxu0 0.0
    %565 = vmatpush2.msra.mxu0 0.0
    %566 = vmatprep.mubr.f32.mxu0 0.0
    %567 = vmatmul.mubr.f32.gmra.mxu0 %v500
    %v568 = vpop.f32.mrf.mxu0
    %v569 = vadd.f32 %v36, %v568
    %v570 = vpop.f32.mrf.mxu0
    %571 = vdwg.mxu0
    %573 = vrot.lane.b32.xlu0 %v395, 96
    %v574 = vpop.permute.xlu0 %573
    %v575 = vsel %vm125, %v574, 0
    %577 = vmatprep.subr.mxu0 0.0
    %578 = vmatpush1.msra.mxu0 0.0
    %579 = vmatprep.subr.mxu0 0.0
    %580 = vmatpush1.msra.mxu0 0.0
    %581 = vmatprep.subr.mxu0 0.0
    %582 = vmatpush1.msra.mxu0 0.0
    %583 = vmatprep.subr.mxu0 0.0
    %584 = vmatpush1.msra.mxu0 0.0
    %585 = vmatprep.subr.mxu0 0.0
    %586 = vmatpush1.msra.mxu0 0.0
    %587 = vmatprep.subr.mxu0 0.0
    %588 = vmatpush1.msra.mxu0 0.0
    %589 = vmatprep.subr.mxu0 0.0
    %590 = vmatpush1.msra.mxu0 0.0
    %591 = vmatprep.subr.mxu0 0.0
    %592 = vmatpush1.msra.mxu0 0.0
    %593 = vmatprep.subr.mxu0 0.0
    %594 = vmatpush1.msra.mxu0 0.0
    %595 = vmatprep.subr.mxu0 0.0
    %596 = vmatpush1.msra.mxu0 0.0
    %597 = vmatprep.subr.mxu0 0.0
    %598 = vmatpush1.msra.mxu0 0.0
    %599 = vmatprep.subr.mxu0 0.0
    %600 = vmatpush1.msra.mxu0 0.0
    %601 = vmatprep.subr.mxu0 0.0
    %602 = vmatpush1.msra.mxu0 %v40
    %603 = vmatprep.subr.mxu0 0.0
    %604 = vmatpush1.msra.mxu0 %v39
    %605 = vmatprep.subr.mxu0 0.0
    %606 = vmatpush1.msra.mxu0 %v38
    %607 = vmatprep.subr.mxu0 0.0
    %608 = vmatpush1.msra.mxu0 %v37
    %609 = vmatprep.subr.mxu0 0.0
    %610 = vmatpush2.msra.mxu0 0.0
    %611 = vmatprep.subr.mxu0 0.0
    %612 = vmatpush2.msra.mxu0 0.0
    %613 = vmatprep.subr.mxu0 0.0
    %614 = vmatpush2.msra.mxu0 0.0
    %615 = vmatprep.subr.mxu0 0.0
    %616 = vmatpush2.msra.mxu0 0.0
    %617 = vmatprep.subr.mxu0 0.0
    %618 = vmatpush2.msra.mxu0 0.0
    %619 = vmatprep.subr.mxu0 0.0
    %620 = vmatpush2.msra.mxu0 0.0
    %621 = vmatprep.subr.mxu0 0.0
    %622 = vmatpush2.msra.mxu0 0.0
    %623 = vmatprep.subr.mxu0 0.0
    %624 = vmatpush2.msra.mxu0 0.0
    %625 = vmatprep.subr.mxu0 0.0
    %626 = vmatpush2.msra.mxu0 0.0
    %627 = vmatprep.subr.mxu0 0.0
    %628 = vmatpush2.msra.mxu0 0.0
    %629 = vmatprep.subr.mxu0 0.0
    %630 = vmatpush2.msra.mxu0 0.0
    %631 = vmatprep.subr.mxu0 0.0
    %632 = vmatpush2.msra.mxu0 0.0
    %633 = vmatprep.subr.mxu0 0.0
    %634 = vmatpush2.msra.mxu0 0.0
    %635 = vmatprep.subr.mxu0 0.0
    %636 = vmatpush2.msra.mxu0 0.0
    %637 = vmatprep.subr.mxu0 0.0
    %638 = vmatpush2.msra.mxu0 0.0
    %639 = vmatprep.subr.mxu0 0.0
    %640 = vmatpush2.msra.mxu0 0.0
    %641 = vmatprep.mubr.f32.mxu0 0.0
    %642 = vmatmul.mubr.f32.gmra.mxu0 %v575
    %v643 = vpop.f32.mrf.mxu0
    %v644 = vadd.f32 %v41, %v643
    %v645 = vpop.f32.mrf.mxu0
    %646 = vdwg.mxu0
    %v647 = vadd.f32 %v569, %v644
    %v648 = vxor.u32 %v647, 2147483648
    %v649 = vmul.f32 %v648, 1.442695
    %v650 = vpow.pop %v649
    %v651 = vadd.f32 %v650, 1.0
    %v652 = vrcp.pop %v651
    %v653 = vmul.f32 1.0, %v652
    %655 = vrot.lane.b32.xlu0 %v644, 64
    %v656 = vpop.permute.xlu0 %655
    %v658 = vmul.f32 %v653, %v656
    %660 = vrot.lane.b32.xlu0 %v658, 64
    %v661 = vpop.permute.xlu0 %660
    %v663 = vadd.f32 %v569, %v661
    %v664 = vtanh.pop %v663
    %v665 = vsub.f32 1.0, %v653
    %667 = vrot.lane.b32.xlu0 %v664, 96
    %v668 = vpop.permute.xlu0 %667
    %v670 = vmul.f32 %v665, %v668
    %v671 = vmul.f32 %v653, %v395
    %v672 = vadd.f32 %v670, %v671
    %673 = vmatprep.subr.mxu0 0.0
    %674 = vmatpush1.msra.mxu0 0.0
    %675 = vmatprep.subr.mxu0 0.0
    %676 = vmatpush1.msra.mxu0 0.0
    %677 = vmatprep.subr.mxu0 0.0
    %678 = vmatpush1.msra.mxu0 0.0
    %679 = vmatprep.subr.mxu0 0.0
    %680 = vmatpush1.msra.mxu0 0.0
    %681 = vmatprep.subr.mxu0 0.0
    %682 = vmatpush1.msra.mxu0 0.0
    %683 = vmatprep.subr.mxu0 0.0
    %684 = vmatpush1.msra.mxu0 0.0
    %685 = vmatprep.subr.mxu0 0.0
    %686 = vmatpush1.msra.mxu0 0.0
    %687 = vmatprep.subr.mxu0 0.0
    %688 = vmatpush1.msra.mxu0 0.0
    %689 = vmatprep.subr.mxu0 0.0
    %690 = vmatpush1.msra.mxu0 0.0
    %691 = vmatprep.subr.mxu0 0.0
    %692 = vmatpush1.msra.mxu0 0.0
    %693 = vmatprep.subr.mxu0 0.0
    %694 = vmatpush1.msra.mxu0 0.0
    %695 = vmatprep.subr.mxu0 0.0
    %696 = vmatpush1.msra.mxu0 0.0
    %697 = vmatprep.subr.mxu0 0.0
    %698 = vmatpush1.msra.mxu0 %v30
    %699 = vmatprep.subr.mxu0 0.0
    %700 = vmatpush1.msra.mxu0 %v29
    %701 = vmatprep.subr.mxu0 0.0
    %702 = vmatpush1.msra.mxu0 %v28
    %703 = vmatprep.subr.mxu0 0.0
    %704 = vmatpush1.msra.mxu0 %v27
    %705 = vmatprep.subr.mxu0 0.0
    %706 = vmatpush2.msra.mxu0 0.0
    %707 = vmatprep.subr.mxu0 0.0
    %708 = vmatpush2.msra.mxu0 0.0
    %709 = vmatprep.subr.mxu0 0.0
    %710 = vmatpush2.msra.mxu0 0.0
    %711 = vmatprep.subr.mxu0 0.0
    %712 = vmatpush2.msra.mxu0 0.0
    %713 = vmatprep.subr.mxu0 0.0
    %714 = vmatpush2.msra.mxu0 0.0
    %715 = vmatprep.subr.mxu0 0.0
    %716 = vmatpush2.msra.mxu0 0.0
    %717 = vmatprep.subr.mxu0 0.0
    %718 = vmatpush2.msra.mxu0 0.0
    %719 = vmatprep.subr.mxu0 0.0
    %720 = vmatpush2.msra.mxu0 0.0
    %721 = vmatprep.subr.mxu0 0.0
    %722 = vmatpush2.msra.mxu0 0.0
    %723 = vmatprep.subr.mxu0 0.0
    %724 = vmatpush2.msra.mxu0 0.0
    %725 = vmatprep.subr.mxu0 0.0
    %726 = vmatpush2.msra.mxu0 0.0
    %727 = vmatprep.subr.mxu0 0.0
    %728 = vmatpush2.msra.mxu0 0.0
    %729 = vmatprep.subr.mxu0 0.0
    %730 = vmatpush2.msra.mxu0 0.0
    %731 = vmatprep.subr.mxu0 0.0
    %732 = vmatpush2.msra.mxu0 0.0
    %733 = vmatprep.subr.mxu0 0.0
    %734 = vmatpush2.msra.mxu0 0.0
    %735 = vmatprep.subr.mxu0 0.0
    %736 = vmatpush2.msra.mxu0 0.0
    %737 = vmatprep.mubr.f32.mxu0 0.0
    %738 = vmatmul.mubr.f32.gmra.mxu0 %v500
    %v739 = vpop.f32.mrf.mxu0
    %v740 = vadd.f32 %v31, %v739
    %v741 = vpop.f32.mrf.mxu0
    %742 = vdwg.mxu0
    %v744 = vrot.slane %v740, 6
    %v746 = vadd.f32 %v122, %v744
    %v747 = vxor.u32 %v746, 2147483648
    %v748 = vmul.f32 %v747, 1.442695
    %v749 = vpow.pop %v748
    %v750 = vadd.f32 %v749, 1.0
    %v751 = vrcp.pop %v750
    %v752 = vmul.f32 1.0, %v751
    %753 = vrot.lane.b32.xlu0 %v744, 64
    %v754 = vpop.permute.xlu0 %753
    %v756 = vmul.f32 %v752, %v754
    %758 = vrot.lane.b32.xlu0 %v756, 64
    %v759 = vpop.permute.xlu0 %758
    %v761 = vadd.f32 %v122, %v759
    %v762 = vtanh.pop %v761
    %v763 = vsub.f32 1.0, %v752
    %765 = vrot.lane.b32.xlu0 %v762, 96
    %v766 = vpop.permute.xlu0 %765
    %v768 = vmul.f32 %v763, %v766
    %v769 = vrot.slane %v495, 7
    %v771 = vmul.f32 %v752, %v769
    %v772 = vadd.f32 %v768, %v771
    %v774 = vrot.slane %v772, 2
    %775 = vrot.lane.b32.xlu0 %v774, 96
    %v776 = vpop.permute.xlu0 %775
    %v777 = vsel %vm125, %v776, 0
    %779 = vmatprep.subr.mxu0 0.0
    %780 = vmatpush1.msra.mxu0 0.0
    %781 = vmatprep.subr.mxu0 0.0
    %782 = vmatpush1.msra.mxu0 0.0
    %783 = vmatprep.subr.mxu0 0.0
    %784 = vmatpush1.msra.mxu0 0.0
    %785 = vmatprep.subr.mxu0 0.0
    %786 = vmatpush1.msra.mxu0 0.0
    %787 = vmatprep.subr.mxu0 0.0
    %788 = vmatpush1.msra.mxu0 0.0
    %789 = vmatprep.subr.mxu0 0.0
    %790 = vmatpush1.msra.mxu0 0.0
    %791 = vmatprep.subr.mxu0 0.0
    %792 = vmatpush1.msra.mxu0 0.0
    %793 = vmatprep.subr.mxu0 0.0
    %794 = vmatpush1.msra.mxu0 0.0
    %795 = vmatprep.subr.mxu0 0.0
    %796 = vmatpush1.msra.mxu0 0.0
    %797 = vmatprep.subr.mxu0 0.0
    %798 = vmatpush1.msra.mxu0 0.0
    %799 = vmatprep.subr.mxu0 0.0
    %800 = vmatpush1.msra.mxu0 0.0
    %801 = vmatprep.subr.mxu0 0.0
    %802 = vmatpush1.msra.mxu0 0.0
    %803 = vmatprep.subr.mxu0 0.0
    %804 = vmatpush1.msra.mxu0 %v35
    %805 = vmatprep.subr.mxu0 0.0
    %806 = vmatpush1.msra.mxu0 %v34
    %807 = vmatprep.subr.mxu0 0.0
    %808 = vmatpush1.msra.mxu0 %v33
    %809 = vmatprep.subr.mxu0 0.0
    %810 = vmatpush1.msra.mxu0 %v32
    %811 = vmatprep.subr.mxu0 0.0
    %812 = vmatpush2.msra.mxu0 0.0
    %813 = vmatprep.subr.mxu0 0.0
    %814 = vmatpush2.msra.mxu0 0.0
    %815 = vmatprep.subr.mxu0 0.0
    %816 = vmatpush2.msra.mxu0 0.0
    %817 = vmatprep.subr.mxu0 0.0
    %818 = vmatpush2.msra.mxu0 0.0
    %819 = vmatprep.subr.mxu0 0.0
    %820 = vmatpush2.msra.mxu0 0.0
    %821 = vmatprep.subr.mxu0 0.0
    %822 = vmatpush2.msra.mxu0 0.0
    %823 = vmatprep.subr.mxu0 0.0
    %824 = vmatpush2.msra.mxu0 0.0
    %825 = vmatprep.subr.mxu0 0.0
    %826 = vmatpush2.msra.mxu0 0.0
    %827 = vmatprep.subr.mxu0 0.0
    %828 = vmatpush2.msra.mxu0 0.0
    %829 = vmatprep.subr.mxu0 0.0
    %830 = vmatpush2.msra.mxu0 0.0
    %831 = vmatprep.subr.mxu0 0.0
    %832 = vmatpush2.msra.mxu0 0.0
    %833 = vmatprep.subr.mxu0 0.0
    %834 = vmatpush2.msra.mxu0 0.0
    %835 = vmatprep.subr.mxu0 0.0
    %836 = vmatpush2.msra.mxu0 0.0
    %837 = vmatprep.subr.mxu0 0.0
    %838 = vmatpush2.msra.mxu0 0.0
    %839 = vmatprep.subr.mxu0 0.0
    %840 = vmatpush2.msra.mxu0 0.0
    %841 = vmatprep.subr.mxu0 0.0
    %842 = vmatpush2.msra.mxu0 0.0
    %843 = vmatprep.mubr.f32.mxu0 0.0
    %844 = vmatmul.mubr.f32.gmra.mxu0 %v777
    %v845 = vpop.f32.mrf.mxu0
    %v846 = vadd.f32 %v36, %v845
    %v847 = vpop.f32.mrf.mxu0
    %848 = vdwg.mxu0
    %850 = vrot.lane.b32.xlu0 %v672, 96
    %v851 = vpop.permute.xlu0 %850
    %v852 = vsel %vm125, %v851, 0
    %854 = vmatprep.subr.mxu0 0.0
    %855 = vmatpush1.msra.mxu0 0.0
    %856 = vmatprep.subr.mxu0 0.0
    %857 = vmatpush1.msra.mxu0 0.0
    %858 = vmatprep.subr.mxu0 0.0
    %859 = vmatpush1.msra.mxu0 0.0
    %860 = vmatprep.subr.mxu0 0.0
    %861 = vmatpush1.msra.mxu0 0.0
    %862 = vmatprep.subr.mxu0 0.0
    %863 = vmatpush1.msra.mxu0 0.0
    %864 = vmatprep.subr.mxu0 0.0
    %865 = vmatpush1.msra.mxu0 0.0
    %866 = vmatprep.subr.mxu0 0.0
    %867 = vmatpush1.msra.mxu0 0.0
    %868 = vmatprep.subr.mxu0 0.0
    %869 = vmatpush1.msra.mxu0 0.0
    %870 = vmatprep.subr.mxu0 0.0
    %871 = vmatpush1.msra.mxu0 0.0
    %872 = vmatprep.subr.mxu0 0.0
    %873 = vmatpush1.msra.mxu0 0.0
    %874 = vmatprep.subr.mxu0 0.0
    %875 = vmatpush1.msra.mxu0 0.0
    %876 = vmatprep.subr.mxu0 0.0
    %877 = vmatpush1.msra.mxu0 0.0
    %878 = vmatprep.subr.mxu0 0.0
    %879 = vmatpush1.msra.mxu0 %v40
    %880 = vmatprep.subr.mxu0 0.0
    %881 = vmatpush1.msra.mxu0 %v39
    %882 = vmatprep.subr.mxu0 0.0
    %883 = vmatpush1.msra.mxu0 %v38
    %884 = vmatprep.subr.mxu0 0.0
    %885 = vmatpush1.msra.mxu0 %v37
    %886 = vmatprep.subr.mxu0 0.0
    %887 = vmatpush2.msra.mxu0 0.0
    %888 = vmatprep.subr.mxu0 0.0
    %889 = vmatpush2.msra.mxu0 0.0
    %890 = vmatprep.subr.mxu0 0.0
    %891 = vmatpush2.msra.mxu0 0.0
    %892 = vmatprep.subr.mxu0 0.0
    %893 = vmatpush2.msra.mxu0 0.0
    %894 = vmatprep.subr.mxu0 0.0
    %895 = vmatpush2.msra.mxu0 0.0
    %896 = vmatprep.subr.mxu0 0.0
    %897 = vmatpush2.msra.mxu0 0.0
    %898 = vmatprep.subr.mxu0 0.0
    %899 = vmatpush2.msra.mxu0 0.0
    %900 = vmatprep.subr.mxu0 0.0
    %901 = vmatpush2.msra.mxu0 0.0
    %902 = vmatprep.subr.mxu0 0.0
    %903 = vmatpush2.msra.mxu0 0.0
    %904 = vmatprep.subr.mxu0 0.0
    %905 = vmatpush2.msra.mxu0 0.0
    %906 = vmatprep.subr.mxu0 0.0
    %907 = vmatpush2.msra.mxu0 0.0
    %908 = vmatprep.subr.mxu0 0.0
    %909 = vmatpush2.msra.mxu0 0.0
    %910 = vmatprep.subr.mxu0 0.0
    %911 = vmatpush2.msra.mxu0 0.0
    %912 = vmatprep.subr.mxu0 0.0
    %913 = vmatpush2.msra.mxu0 0.0
    %914 = vmatprep.subr.mxu0 0.0
    %915 = vmatpush2.msra.mxu0 0.0
    %916 = vmatprep.subr.mxu0 0.0
    %917 = vmatpush2.msra.mxu0 0.0
    %918 = vmatprep.mubr.f32.mxu0 0.0
    %919 = vmatmul.mubr.f32.gmra.mxu0 %v852
    %v920 = vpop.f32.mrf.mxu0
    %v921 = vadd.f32 %v41, %v920
    %v922 = vpop.f32.mrf.mxu0
    %923 = vdwg.mxu0
    %v924 = vadd.f32 %v846, %v921
    %v925 = vxor.u32 %v924, 2147483648
    %v926 = vmul.f32 %v925, 1.442695
    %v927 = vpow.pop %v926
    %v928 = vadd.f32 %v927, 1.0
    %v929 = vrcp.pop %v928
    %v930 = vmul.f32 1.0, %v929
    %932 = vrot.lane.b32.xlu0 %v921, 64
    %v933 = vpop.permute.xlu0 %932
    %v935 = vmul.f32 %v930, %v933
    %937 = vrot.lane.b32.xlu0 %v935, 64
    %v938 = vpop.permute.xlu0 %937
    %v940 = vadd.f32 %v846, %v938
    %v941 = vtanh.pop %v940
    %v942 = vsub.f32 1.0, %v930
    %944 = vrot.lane.b32.xlu0 %v941, 96
    %v945 = vpop.permute.xlu0 %944
    %v947 = vmul.f32 %v942, %v945
    %v948 = vmul.f32 %v930, %v672
    %v949 = vadd.f32 %v947, %v948
    %950 = vmatprep.subr.mxu0 0.0
    %951 = vmatpush1.msra.mxu0 0.0
    %952 = vmatprep.subr.mxu0 0.0
    %953 = vmatpush1.msra.mxu0 0.0
    %954 = vmatprep.subr.mxu0 0.0
    %955 = vmatpush1.msra.mxu0 0.0
    %956 = vmatprep.subr.mxu0 0.0
    %957 = vmatpush1.msra.mxu0 0.0
    %958 = vmatprep.subr.mxu0 0.0
    %959 = vmatpush1.msra.mxu0 0.0
    %960 = vmatprep.subr.mxu0 0.0
    %961 = vmatpush1.msra.mxu0 0.0
    %962 = vmatprep.subr.mxu0 0.0
    %963 = vmatpush1.msra.mxu0 0.0
    %964 = vmatprep.subr.mxu0 0.0
    %965 = vmatpush1.msra.mxu0 0.0
    %966 = vmatprep.subr.mxu0 0.0
    %967 = vmatpush1.msra.mxu0 0.0
    %968 = vmatprep.subr.mxu0 0.0
    %969 = vmatpush1.msra.mxu0 0.0
    %970 = vmatprep.subr.mxu0 0.0
    %971 = vmatpush1.msra.mxu0 0.0
    %972 = vmatprep.subr.mxu0 0.0
    %973 = vmatpush1.msra.mxu0 0.0
    %974 = vmatprep.subr.mxu0 0.0
    %975 = vmatpush1.msra.mxu0 %v30
    %976 = vmatprep.subr.mxu0 0.0
    %977 = vmatpush1.msra.mxu0 %v29
    %978 = vmatprep.subr.mxu0 0.0
    %979 = vmatpush1.msra.mxu0 %v28
    %980 = vmatprep.subr.mxu0 0.0
    %981 = vmatpush1.msra.mxu0 %v27
    %982 = vmatprep.subr.mxu0 0.0
    %983 = vmatpush2.msra.mxu0 0.0
    %984 = vmatprep.subr.mxu0 0.0
    %985 = vmatpush2.msra.mxu0 0.0
    %986 = vmatprep.subr.mxu0 0.0
    %987 = vmatpush2.msra.mxu0 0.0
    %988 = vmatprep.subr.mxu0 0.0
    %989 = vmatpush2.msra.mxu0 0.0
    %990 = vmatprep.subr.mxu0 0.0
    %991 = vmatpush2.msra.mxu0 0.0
    %992 = vmatprep.subr.mxu0 0.0
    %993 = vmatpush2.msra.mxu0 0.0
    %994 = vmatprep.subr.mxu0 0.0
    %995 = vmatpush2.msra.mxu0 0.0
    %996 = vmatprep.subr.mxu0 0.0
    %997 = vmatpush2.msra.mxu0 0.0
    %998 = vmatprep.subr.mxu0 0.0
    %999 = vmatpush2.msra.mxu0 0.0
    %1000 = vmatprep.subr.mxu0 0.0
    %1001 = vmatpush2.msra.mxu0 0.0
    %1002 = vmatprep.subr.mxu0 0.0
    %1003 = vmatpush2.msra.mxu0 0.0
    %1004 = vmatprep.subr.mxu0 0.0
    %1005 = vmatpush2.msra.mxu0 0.0
    %1006 = vmatprep.subr.mxu0 0.0
    %1007 = vmatpush2.msra.mxu0 0.0
    %1008 = vmatprep.subr.mxu0 0.0
    %1009 = vmatpush2.msra.mxu0 0.0
    %1010 = vmatprep.subr.mxu0 0.0
    %1011 = vmatpush2.msra.mxu0 0.0
    %1012 = vmatprep.subr.mxu0 0.0
    %1013 = vmatpush2.msra.mxu0 0.0
    %1014 = vmatprep.mubr.f32.mxu0 0.0
    %1015 = vmatmul.mubr.f32.gmra.mxu0 %v777
    %v1016 = vpop.f32.mrf.mxu0
    %v1017 = vadd.f32 %v31, %v1016
    %v1018 = vpop.f32.mrf.mxu0
    %1019 = vdwg.mxu0
    %v1021 = vrot.slane %v1017, 5
    %v1023 = vadd.f32 %v122, %v1021
    %v1024 = vxor.u32 %v1023, 2147483648
    %v1025 = vmul.f32 %v1024, 1.442695
    %v1026 = vpow.pop %v1025
    %v1027 = vadd.f32 %v1026, 1.0
    %v1028 = vrcp.pop %v1027
    %v1029 = vmul.f32 1.0, %v1028
    %1030 = vrot.lane.b32.xlu0 %v1021, 64
    %v1031 = vpop.permute.xlu0 %1030
    %v1033 = vmul.f32 %v1029, %v1031
    %1035 = vrot.lane.b32.xlu0 %v1033, 64
    %v1036 = vpop.permute.xlu0 %1035
    %v1038 = vadd.f32 %v122, %v1036
    %v1039 = vtanh.pop %v1038
    %v1040 = vsub.f32 1.0, %v1029
    %1042 = vrot.lane.b32.xlu0 %v1039, 96
    %v1043 = vpop.permute.xlu0 %1042
    %v1045 = vmul.f32 %v1040, %v1043
    %v1046 = vrot.slane %v772, 7
    %v1048 = vmul.f32 %v1029, %v1046
    %v1049 = vadd.f32 %v1045, %v1048
    %v1051 = vrot.slane %v1049, 3
    %1052 = vrot.lane.b32.xlu0 %v1051, 96
    %v1053 = vpop.permute.xlu0 %1052
    %v1054 = vsel %vm125, %v1053, 0
    %1056 = vmatprep.subr.mxu0 0.0
    %1057 = vmatpush1.msra.mxu0 0.0
    %1058 = vmatprep.subr.mxu0 0.0
    %1059 = vmatpush1.msra.mxu0 0.0
    %1060 = vmatprep.subr.mxu0 0.0
    %1061 = vmatpush1.msra.mxu0 0.0
    %1062 = vmatprep.subr.mxu0 0.0
    %1063 = vmatpush1.msra.mxu0 0.0
    %1064 = vmatprep.subr.mxu0 0.0
    %1065 = vmatpush1.msra.mxu0 0.0
    %1066 = vmatprep.subr.mxu0 0.0
    %1067 = vmatpush1.msra.mxu0 0.0
    %1068 = vmatprep.subr.mxu0 0.0
    %1069 = vmatpush1.msra.mxu0 0.0
    %1070 = vmatprep.subr.mxu0 0.0
    %1071 = vmatpush1.msra.mxu0 0.0
    %1072 = vmatprep.subr.mxu0 0.0
    %1073 = vmatpush1.msra.mxu0 0.0
    %1074 = vmatprep.subr.mxu0 0.0
    %1075 = vmatpush1.msra.mxu0 0.0
    %1076 = vmatprep.subr.mxu0 0.0
    %1077 = vmatpush1.msra.mxu0 0.0
    %1078 = vmatprep.subr.mxu0 0.0
    %1079 = vmatpush1.msra.mxu0 0.0
    %1080 = vmatprep.subr.mxu0 0.0
    %1081 = vmatpush1.msra.mxu0 %v35
    %1082 = vmatprep.subr.mxu0 0.0
    %1083 = vmatpush1.msra.mxu0 %v34
    %1084 = vmatprep.subr.mxu0 0.0
    %1085 = vmatpush1.msra.mxu0 %v33
    %1086 = vmatprep.subr.mxu0 0.0
    %1087 = vmatpush1.msra.mxu0 %v32
    %1088 = vmatprep.subr.mxu0 0.0
    %1089 = vmatpush2.msra.mxu0 0.0
    %1090 = vmatprep.subr.mxu0 0.0
    %1091 = vmatpush2.msra.mxu0 0.0
    %1092 = vmatprep.subr.mxu0 0.0
    %1093 = vmatpush2.msra.mxu0 0.0
    %1094 = vmatprep.subr.mxu0 0.0
    %1095 = vmatpush2.msra.mxu0 0.0
    %1096 = vmatprep.subr.mxu0 0.0
    %1097 = vmatpush2.msra.mxu0 0.0
    %1098 = vmatprep.subr.mxu0 0.0
    %1099 = vmatpush2.msra.mxu0 0.0
    %1100 = vmatprep.subr.mxu0 0.0
    %1101 = vmatpush2.msra.mxu0 0.0
    %1102 = vmatprep.subr.mxu0 0.0
    %1103 = vmatpush2.msra.mxu0 0.0
    %1104 = vmatprep.subr.mxu0 0.0
    %1105 = vmatpush2.msra.mxu0 0.0
    %1106 = vmatprep.subr.mxu0 0.0
    %1107 = vmatpush2.msra.mxu0 0.0
    %1108 = vmatprep.subr.mxu0 0.0
    %1109 = vmatpush2.msra.mxu0 0.0
    %1110 = vmatprep.subr.mxu0 0.0
    %1111 = vmatpush2.msra.mxu0 0.0
    %1112 = vmatprep.subr.mxu0 0.0
    %1113 = vmatpush2.msra.mxu0 0.0
    %1114 = vmatprep.subr.mxu0 0.0
    %1115 = vmatpush2.msra.mxu0 0.0
    %1116 = vmatprep.subr.mxu0 0.0
    %1117 = vmatpush2.msra.mxu0 0.0
    %1118 = vmatprep.subr.mxu0 0.0
    %1119 = vmatpush2.msra.mxu0 0.0
    %1120 = vmatprep.mubr.f32.mxu0 0.0
    %1121 = vmatmul.mubr.f32.gmra.mxu0 %v1054
    %v1122 = vpop.f32.mrf.mxu0
    %v1123 = vadd.f32 %v36, %v1122
    %v1124 = vpop.f32.mrf.mxu0
    %1125 = vdwg.mxu0
    %1127 = vrot.lane.b32.xlu0 %v949, 96
    %v1128 = vpop.permute.xlu0 %1127
    %v1129 = vsel %vm125, %v1128, 0
    %1131 = vmatprep.subr.mxu0 0.0
    %1132 = vmatpush1.msra.mxu0 0.0
    %1133 = vmatprep.subr.mxu0 0.0
    %1134 = vmatpush1.msra.mxu0 0.0
    %1135 = vmatprep.subr.mxu0 0.0
    %1136 = vmatpush1.msra.mxu0 0.0
    %1137 = vmatprep.subr.mxu0 0.0
    %1138 = vmatpush1.msra.mxu0 0.0
    %1139 = vmatprep.subr.mxu0 0.0
    %1140 = vmatpush1.msra.mxu0 0.0
    %1141 = vmatprep.subr.mxu0 0.0
    %1142 = vmatpush1.msra.mxu0 0.0
    %1143 = vmatprep.subr.mxu0 0.0
    %1144 = vmatpush1.msra.mxu0 0.0
    %1145 = vmatprep.subr.mxu0 0.0
    %1146 = vmatpush1.msra.mxu0 0.0
    %1147 = vmatprep.subr.mxu0 0.0
    %1148 = vmatpush1.msra.mxu0 0.0
    %1149 = vmatprep.subr.mxu0 0.0
    %1150 = vmatpush1.msra.mxu0 0.0
    %1151 = vmatprep.subr.mxu0 0.0
    %1152 = vmatpush1.msra.mxu0 0.0
    %1153 = vmatprep.subr.mxu0 0.0
    %1154 = vmatpush1.msra.mxu0 0.0
    %1155 = vmatprep.subr.mxu0 0.0
    %1156 = vmatpush1.msra.mxu0 %v40
    %1157 = vmatprep.subr.mxu0 0.0
    %1158 = vmatpush1.msra.mxu0 %v39
    %1159 = vmatprep.subr.mxu0 0.0
    %1160 = vmatpush1.msra.mxu0 %v38
    %1161 = vmatprep.subr.mxu0 0.0
    %1162 = vmatpush1.msra.mxu0 %v37
    %1163 = vmatprep.subr.mxu0 0.0
    %1164 = vmatpush2.msra.mxu0 0.0
    %1165 = vmatprep.subr.mxu0 0.0
    %1166 = vmatpush2.msra.mxu0 0.0
    %1167 = vmatprep.subr.mxu0 0.0
    %1168 = vmatpush2.msra.mxu0 0.0
    %1169 = vmatprep.subr.mxu0 0.0
    %1170 = vmatpush2.msra.mxu0 0.0
    %1171 = vmatprep.subr.mxu0 0.0
    %1172 = vmatpush2.msra.mxu0 0.0
    %1173 = vmatprep.subr.mxu0 0.0
    %1174 = vmatpush2.msra.mxu0 0.0
    %1175 = vmatprep.subr.mxu0 0.0
    %1176 = vmatpush2.msra.mxu0 0.0
    %1177 = vmatprep.subr.mxu0 0.0
    %1178 = vmatpush2.msra.mxu0 0.0
    %1179 = vmatprep.subr.mxu0 0.0
    %1180 = vmatpush2.msra.mxu0 0.0
    %1181 = vmatprep.subr.mxu0 0.0
    %1182 = vmatpush2.msra.mxu0 0.0
    %1183 = vmatprep.subr.mxu0 0.0
    %1184 = vmatpush2.msra.mxu0 0.0
    %1185 = vmatprep.subr.mxu0 0.0
    %1186 = vmatpush2.msra.mxu0 0.0
    %1187 = vmatprep.subr.mxu0 0.0
    %1188 = vmatpush2.msra.mxu0 0.0
    %1189 = vmatprep.subr.mxu0 0.0
    %1190 = vmatpush2.msra.mxu0 0.0
    %1191 = vmatprep.subr.mxu0 0.0
    %1192 = vmatpush2.msra.mxu0 0.0
    %1193 = vmatprep.subr.mxu0 0.0
    %1194 = vmatpush2.msra.mxu0 0.0
    %1195 = vmatprep.mubr.f32.mxu0 0.0
    %1196 = vmatmul.mubr.f32.gmra.mxu0 %v1129
    %v1197 = vpop.f32.mrf.mxu0
    %v1198 = vadd.f32 %v41, %v1197
    %v1199 = vpop.f32.mrf.mxu0
    %1200 = vdwg.mxu0
    %v1201 = vadd.f32 %v1123, %v1198
    %v1202 = vxor.u32 %v1201, 2147483648
    %v1203 = vmul.f32 %v1202, 1.442695
    %v1204 = vpow.pop %v1203
    %v1205 = vadd.f32 %v1204, 1.0
    %v1206 = vrcp.pop %v1205
    %v1207 = vmul.f32 1.0, %v1206
    %1209 = vrot.lane.b32.xlu0 %v1198, 64
    %v1210 = vpop.permute.xlu0 %1209
    %v1212 = vmul.f32 %v1207, %v1210
    %1214 = vrot.lane.b32.xlu0 %v1212, 64
    %v1215 = vpop.permute.xlu0 %1214
    %v1217 = vadd.f32 %v1123, %v1215
    %v1218 = vtanh.pop %v1217
    %v1219 = vsub.f32 1.0, %v1207
    %1221 = vrot.lane.b32.xlu0 %v1218, 96
    %v1222 = vpop.permute.xlu0 %1221
    %v1224 = vmul.f32 %v1219, %v1222
    %v1225 = vmul.f32 %v1207, %v949
    %v1226 = vadd.f32 %v1224, %v1225
    %1227 = vmatprep.subr.mxu0 0.0
    %1228 = vmatpush1.msra.mxu0 0.0
    %1229 = vmatprep.subr.mxu0 0.0
    %1230 = vmatpush1.msra.mxu0 0.0
    %1231 = vmatprep.subr.mxu0 0.0
    %1232 = vmatpush1.msra.mxu0 0.0
    %1233 = vmatprep.subr.mxu0 0.0
    %1234 = vmatpush1.msra.mxu0 0.0
    %1235 = vmatprep.subr.mxu0 0.0
    %1236 = vmatpush1.msra.mxu0 0.0
    %1237 = vmatprep.subr.mxu0 0.0
    %1238 = vmatpush1.msra.mxu0 0.0
    %1239 = vmatprep.subr.mxu0 0.0
    %1240 = vmatpush1.msra.mxu0 0.0
    %1241 = vmatprep.subr.mxu0 0.0
    %1242 = vmatpush1.msra.mxu0 0.0
    %1243 = vmatprep.subr.mxu0 0.0
    %1244 = vmatpush1.msra.mxu0 0.0
    %1245 = vmatprep.subr.mxu0 0.0
    %1246 = vmatpush1.msra.mxu0 0.0
    %1247 = vmatprep.subr.mxu0 0.0
    %1248 = vmatpush1.msra.mxu0 0.0
    %1249 = vmatprep.subr.mxu0 0.0
    %1250 = vmatpush1.msra.mxu0 0.0
    %1251 = vmatprep.subr.mxu0 0.0
    %1252 = vmatpush1.msra.mxu0 %v30
    %1253 = vmatprep.subr.mxu0 0.0
    %1254 = vmatpush1.msra.mxu0 %v29
    %1255 = vmatprep.subr.mxu0 0.0
    %1256 = vmatpush1.msra.mxu0 %v28
    %1257 = vmatprep.subr.mxu0 0.0
    %1258 = vmatpush1.msra.mxu0 %v27
    %1259 = vmatprep.subr.mxu0 0.0
    %1260 = vmatpush2.msra.mxu0 0.0
    %1261 = vmatprep.subr.mxu0 0.0
    %1262 = vmatpush2.msra.mxu0 0.0
    %1263 = vmatprep.subr.mxu0 0.0
    %1264 = vmatpush2.msra.mxu0 0.0
    %1265 = vmatprep.subr.mxu0 0.0
    %1266 = vmatpush2.msra.mxu0 0.0
    %1267 = vmatprep.subr.mxu0 0.0
    %1268 = vmatpush2.msra.mxu0 0.0
    %1269 = vmatprep.subr.mxu0 0.0
    %1270 = vmatpush2.msra.mxu0 0.0
    %1271 = vmatprep.subr.mxu0 0.0
    %1272 = vmatpush2.msra.mxu0 0.0
    %1273 = vmatprep.subr.mxu0 0.0
    %1274 = vmatpush2.msra.mxu0 0.0
    %1275 = vmatprep.subr.mxu0 0.0
    %1276 = vmatpush2.msra.mxu0 0.0
    %1277 = vmatprep.subr.mxu0 0.0
    %1278 = vmatpush2.msra.mxu0 0.0
    %1279 = vmatprep.subr.mxu0 0.0
    %1280 = vmatpush2.msra.mxu0 0.0
    %1281 = vmatprep.subr.mxu0 0.0
    %1282 = vmatpush2.msra.mxu0 0.0
    %1283 = vmatprep.subr.mxu0 0.0
    %1284 = vmatpush2.msra.mxu0 0.0
    %1285 = vmatprep.subr.mxu0 0.0
    %1286 = vmatpush2.msra.mxu0 0.0
    %1287 = vmatprep.subr.mxu0 0.0
    %1288 = vmatpush2.msra.mxu0 0.0
    %1289 = vmatprep.subr.mxu0 0.0
    %1290 = vmatpush2.msra.mxu0 0.0
    %1291 = vmatprep.mubr.f32.mxu0 0.0
    %1292 = vmatmul.mubr.f32.gmra.mxu0 %v1054
    %v1293 = vpop.f32.mrf.mxu0
    %v1294 = vadd.f32 %v31, %v1293
    %v1295 = vpop.f32.mrf.mxu0
    %1296 = vdwg.mxu0
    %v1298 = vrot.slane %v1294, 4
    %v1300 = vadd.f32 %v122, %v1298
    %v1301 = vxor.u32 %v1300, 2147483648
    %v1302 = vmul.f32 %v1301, 1.442695
    %v1303 = vpow.pop %v1302
    %v1304 = vadd.f32 %v1303, 1.0
    %v1305 = vrcp.pop %v1304
    %v1306 = vmul.f32 1.0, %v1305
    %1307 = vrot.lane.b32.xlu0 %v1298, 64
    %v1308 = vpop.permute.xlu0 %1307
    %v1310 = vmul.f32 %v1306, %v1308
    %1312 = vrot.lane.b32.xlu0 %v1310, 64
    %v1313 = vpop.permute.xlu0 %1312
    %v1315 = vadd.f32 %v122, %v1313
    %v1316 = vtanh.pop %v1315
    %v1317 = vsub.f32 1.0, %v1306
    %1319 = vrot.lane.b32.xlu0 %v1316, 96
    %v1320 = vpop.permute.xlu0 %1319
    %v1322 = vmul.f32 %v1317, %v1320
    %v1323 = vrot.slane %v1049, 7
    %v1325 = vmul.f32 %v1306, %v1323
    %v1326 = vadd.f32 %v1322, %v1325
    %v1328 = vrot.slane %v1326, 4
    %1329 = vrot.lane.b32.xlu0 %v1328, 96
    %v1330 = vpop.permute.xlu0 %1329
    %v1331 = vsel %vm125, %v1330, 0
    %1333 = vmatprep.subr.mxu0 0.0
    %1334 = vmatpush1.msra.mxu0 0.0
    %1335 = vmatprep.subr.mxu0 0.0
    %1336 = vmatpush1.msra.mxu0 0.0
    %1337 = vmatprep.subr.mxu0 0.0
    %1338 = vmatpush1.msra.mxu0 0.0
    %1339 = vmatprep.subr.mxu0 0.0
    %1340 = vmatpush1.msra.mxu0 0.0
    %1341 = vmatprep.subr.mxu0 0.0
    %1342 = vmatpush1.msra.mxu0 0.0
    %1343 = vmatprep.subr.mxu0 0.0
    %1344 = vmatpush1.msra.mxu0 0.0
    %1345 = vmatprep.subr.mxu0 0.0
    %1346 = vmatpush1.msra.mxu0 0.0
    %1347 = vmatprep.subr.mxu0 0.0
    %1348 = vmatpush1.msra.mxu0 0.0
    %1349 = vmatprep.subr.mxu0 0.0
    %1350 = vmatpush1.msra.mxu0 0.0
    %1351 = vmatprep.subr.mxu0 0.0
    %1352 = vmatpush1.msra.mxu0 0.0
    %1353 = vmatprep.subr.mxu0 0.0
    %1354 = vmatpush1.msra.mxu0 0.0
    %1355 = vmatprep.subr.mxu0 0.0
    %1356 = vmatpush1.msra.mxu0 0.0
    %1357 = vmatprep.subr.mxu0 0.0
    %1358 = vmatpush1.msra.mxu0 %v35
    %1359 = vmatprep.subr.mxu0 0.0
    %1360 = vmatpush1.msra.mxu0 %v34
    %1361 = vmatprep.subr.mxu0 0.0
    %1362 = vmatpush1.msra.mxu0 %v33
    %1363 = vmatprep.subr.mxu0 0.0
    %1364 = vmatpush1.msra.mxu0 %v32
    %1365 = vmatprep.subr.mxu0 0.0
    %1366 = vmatpush2.msra.mxu0 0.0
    %1367 = vmatprep.subr.mxu0 0.0
    %1368 = vmatpush2.msra.mxu0 0.0
    %1369 = vmatprep.subr.mxu0 0.0
    %1370 = vmatpush2.msra.mxu0 0.0
    %1371 = vmatprep.subr.mxu0 0.0
    %1372 = vmatpush2.msra.mxu0 0.0
    %1373 = vmatprep.subr.mxu0 0.0
    %1374 = vmatpush2.msra.mxu0 0.0
    %1375 = vmatprep.subr.mxu0 0.0
    %1376 = vmatpush2.msra.mxu0 0.0
    %1377 = vmatprep.subr.mxu0 0.0
    %1378 = vmatpush2.msra.mxu0 0.0
    %1379 = vmatprep.subr.mxu0 0.0
    %1380 = vmatpush2.msra.mxu0 0.0
    %1381 = vmatprep.subr.mxu0 0.0
    %1382 = vmatpush2.msra.mxu0 0.0
    %1383 = vmatprep.subr.mxu0 0.0
    %1384 = vmatpush2.msra.mxu0 0.0
    %1385 = vmatprep.subr.mxu0 0.0
    %1386 = vmatpush2.msra.mxu0 0.0
    %1387 = vmatprep.subr.mxu0 0.0
    %1388 = vmatpush2.msra.mxu0 0.0
    %1389 = vmatprep.subr.mxu0 0.0
    %1390 = vmatpush2.msra.mxu0 0.0
    %1391 = vmatprep.subr.mxu0 0.0
    %1392 = vmatpush2.msra.mxu0 0.0
    %1393 = vmatprep.subr.mxu0 0.0
    %1394 = vmatpush2.msra.mxu0 0.0
    %1395 = vmatprep.subr.mxu0 0.0
    %1396 = vmatpush2.msra.mxu0 0.0
    %1397 = vmatprep.mubr.f32.mxu0 0.0
    %1398 = vmatmul.mubr.f32.gmra.mxu0 %v1331
    %v1399 = vpop.f32.mrf.mxu0
    %v1400 = vadd.f32 %v36, %v1399
    %v1401 = vpop.f32.mrf.mxu0
    %1402 = vdwg.mxu0
    %1404 = vrot.lane.b32.xlu0 %v1226, 96
    %v1405 = vpop.permute.xlu0 %1404
    %v1406 = vsel %vm125, %v1405, 0
    %1408 = vmatprep.subr.mxu0 0.0
    %1409 = vmatpush1.msra.mxu0 0.0
    %1410 = vmatprep.subr.mxu0 0.0
    %1411 = vmatpush1.msra.mxu0 0.0
    %1412 = vmatprep.subr.mxu0 0.0
    %1413 = vmatpush1.msra.mxu0 0.0
    %1414 = vmatprep.subr.mxu0 0.0
    %1415 = vmatpush1.msra.mxu0 0.0
    %1416 = vmatprep.subr.mxu0 0.0
    %1417 = vmatpush1.msra.mxu0 0.0
    %1418 = vmatprep.subr.mxu0 0.0
    %1419 = vmatpush1.msra.mxu0 0.0
    %1420 = vmatprep.subr.mxu0 0.0
    %1421 = vmatpush1.msra.mxu0 0.0
    %1422 = vmatprep.subr.mxu0 0.0
    %1423 = vmatpush1.msra.mxu0 0.0
    %1424 = vmatprep.subr.mxu0 0.0
    %1425 = vmatpush1.msra.mxu0 0.0
    %1426 = vmatprep.subr.mxu0 0.0
    %1427 = vmatpush1.msra.mxu0 0.0
    %1428 = vmatprep.subr.mxu0 0.0
    %1429 = vmatpush1.msra.mxu0 0.0
    %1430 = vmatprep.subr.mxu0 0.0
    %1431 = vmatpush1.msra.mxu0 0.0
    %1432 = vmatprep.subr.mxu0 0.0
    %1433 = vmatpush1.msra.mxu0 %v40
    %1434 = vmatprep.subr.mxu0 0.0
    %1435 = vmatpush1.msra.mxu0 %v39
    %1436 = vmatprep.subr.mxu0 0.0
    %1437 = vmatpush1.msra.mxu0 %v38
    %1438 = vmatprep.subr.mxu0 0.0
    %1439 = vmatpush1.msra.mxu0 %v37
    %1440 = vmatprep.subr.mxu0 0.0
    %1441 = vmatpush2.msra.mxu0 0.0
    %1442 = vmatprep.subr.mxu0 0.0
    %1443 = vmatpush2.msra.mxu0 0.0
    %1444 = vmatprep.subr.mxu0 0.0
    %1445 = vmatpush2.msra.mxu0 0.0
    %1446 = vmatprep.subr.mxu0 0.0
    %1447 = vmatpush2.msra.mxu0 0.0
    %1448 = vmatprep.subr.mxu0 0.0
    %1449 = vmatpush2.msra.mxu0 0.0
    %1450 = vmatprep.subr.mxu0 0.0
    %1451 = vmatpush2.msra.mxu0 0.0
    %1452 = vmatprep.subr.mxu0 0.0
    %1453 = vmatpush2.msra.mxu0 0.0
    %1454 = vmatprep.subr.mxu0 0.0
    %1455 = vmatpush2.msra.mxu0 0.0
    %1456 = vmatprep.subr.mxu0 0.0
    %1457 = vmatpush2.msra.mxu0 0.0
    %1458 = vmatprep.subr.mxu0 0.0
    %1459 = vmatpush2.msra.mxu0 0.0
    %1460 = vmatprep.subr.mxu0 0.0
    %1461 = vmatpush2.msra.mxu0 0.0
    %1462 = vmatprep.subr.mxu0 0.0
    %1463 = vmatpush2.msra.mxu0 0.0
    %1464 = vmatprep.subr.mxu0 0.0
    %1465 = vmatpush2.msra.mxu0 0.0
    %1466 = vmatprep.subr.mxu0 0.0
    %1467 = vmatpush2.msra.mxu0 0.0
    %1468 = vmatprep.subr.mxu0 0.0
    %1469 = vmatpush2.msra.mxu0 0.0
    %1470 = vmatprep.subr.mxu0 0.0
    %1471 = vmatpush2.msra.mxu0 0.0
    %1472 = vmatprep.mubr.f32.mxu0 0.0
    %1473 = vmatmul.mubr.f32.gmra.mxu0 %v1406
    %v1474 = vpop.f32.mrf.mxu0
    %v1475 = vadd.f32 %v41, %v1474
    %v1476 = vpop.f32.mrf.mxu0
    %1477 = vdwg.mxu0
    %v1478 = vadd.f32 %v1400, %v1475
    %v1479 = vxor.u32 %v1478, 2147483648
    %v1480 = vmul.f32 %v1479, 1.442695
    %v1481 = vpow.pop %v1480
    %v1482 = vadd.f32 %v1481, 1.0
    %v1483 = vrcp.pop %v1482
    %v1484 = vmul.f32 1.0, %v1483
    %1486 = vrot.lane.b32.xlu0 %v1475, 64
    %v1487 = vpop.permute.xlu0 %1486
    %v1489 = vmul.f32 %v1484, %v1487
    %1491 = vrot.lane.b32.xlu0 %v1489, 64
    %v1492 = vpop.permute.xlu0 %1491
    %v1494 = vadd.f32 %v1400, %v1492
    %v1495 = vtanh.pop %v1494
    %v1496 = vsub.f32 1.0, %v1484
    %1498 = vrot.lane.b32.xlu0 %v1495, 96
    %v1499 = vpop.permute.xlu0 %1498
    %v1501 = vmul.f32 %v1496, %v1499
    %v1502 = vmul.f32 %v1484, %v1226
    %v1503 = vadd.f32 %v1501, %v1502
    %1504 = vmatprep.subr.mxu0 0.0
    %1505 = vmatpush1.msra.mxu0 0.0
    %1506 = vmatprep.subr.mxu0 0.0
    %1507 = vmatpush1.msra.mxu0 0.0
    %1508 = vmatprep.subr.mxu0 0.0
    %1509 = vmatpush1.msra.mxu0 0.0
    %1510 = vmatprep.subr.mxu0 0.0
    %1511 = vmatpush1.msra.mxu0 0.0
    %1512 = vmatprep.subr.mxu0 0.0
    %1513 = vmatpush1.msra.mxu0 0.0
    %1514 = vmatprep.subr.mxu0 0.0
    %1515 = vmatpush1.msra.mxu0 0.0
    %1516 = vmatprep.subr.mxu0 0.0
    %1517 = vmatpush1.msra.mxu0 0.0
    %1518 = vmatprep.subr.mxu0 0.0
    %1519 = vmatpush1.msra.mxu0 0.0
    %1520 = vmatprep.subr.mxu0 0.0
    %1521 = vmatpush1.msra.mxu0 0.0
    %1522 = vmatprep.subr.mxu0 0.0
    %1523 = vmatpush1.msra.mxu0 0.0
    %1524 = vmatprep.subr.mxu0 0.0
    %1525 = vmatpush1.msra.mxu0 0.0
    %1526 = vmatprep.subr.mxu0 0.0
    %1527 = vmatpush1.msra.mxu0 0.0
    %1528 = vmatprep.subr.mxu0 0.0
    %1529 = vmatpush1.msra.mxu0 %v30
    %1530 = vmatprep.subr.mxu0 0.0
    %1531 = vmatpush1.msra.mxu0 %v29
    %1532 = vmatprep.subr.mxu0 0.0
    %1533 = vmatpush1.msra.mxu0 %v28
    %1534 = vmatprep.subr.mxu0 0.0
    %1535 = vmatpush1.msra.mxu0 %v27
    %1536 = vmatprep.subr.mxu0 0.0
    %1537 = vmatpush2.msra.mxu0 0.0
    %1538 = vmatprep.subr.mxu0 0.0
    %1539 = vmatpush2.msra.mxu0 0.0
    %1540 = vmatprep.subr.mxu0 0.0
    %1541 = vmatpush2.msra.mxu0 0.0
    %1542 = vmatprep.subr.mxu0 0.0
    %1543 = vmatpush2.msra.mxu0 0.0
    %1544 = vmatprep.subr.mxu0 0.0
    %1545 = vmatpush2.msra.mxu0 0.0
    %1546 = vmatprep.subr.mxu0 0.0
    %1547 = vmatpush2.msra.mxu0 0.0
    %1548 = vmatprep.subr.mxu0 0.0
    %1549 = vmatpush2.msra.mxu0 0.0
    %1550 = vmatprep.subr.mxu0 0.0
    %1551 = vmatpush2.msra.mxu0 0.0
    %1552 = vmatprep.subr.mxu0 0.0
    %1553 = vmatpush2.msra.mxu0 0.0
    %1554 = vmatprep.subr.mxu0 0.0
    %1555 = vmatpush2.msra.mxu0 0.0
    %1556 = vmatprep.subr.mxu0 0.0
    %1557 = vmatpush2.msra.mxu0 0.0
    %1558 = vmatprep.subr.mxu0 0.0
    %1559 = vmatpush2.msra.mxu0 0.0
    %1560 = vmatprep.subr.mxu0 0.0
    %1561 = vmatpush2.msra.mxu0 0.0
    %1562 = vmatprep.subr.mxu0 0.0
    %1563 = vmatpush2.msra.mxu0 0.0
    %1564 = vmatprep.subr.mxu0 0.0
    %1565 = vmatpush2.msra.mxu0 0.0
    %1566 = vmatprep.subr.mxu0 0.0
    %1567 = vmatpush2.msra.mxu0 0.0
    %1568 = vmatprep.mubr.f32.mxu0 0.0
    %1569 = vmatmul.mubr.f32.gmra.mxu0 %v1331
    %v1570 = vpop.f32.mrf.mxu0
    %v1571 = vadd.f32 %v31, %v1570
    %v1572 = vpop.f32.mrf.mxu0
    %1573 = vdwg.mxu0
    %v1575 = vrot.slane %v1571, 3
    %v1577 = vadd.f32 %v122, %v1575
    %v1578 = vxor.u32 %v1577, 2147483648
    %v1579 = vmul.f32 %v1578, 1.442695
    %v1580 = vpow.pop %v1579
    %v1581 = vadd.f32 %v1580, 1.0
    %v1582 = vrcp.pop %v1581
    %v1583 = vmul.f32 1.0, %v1582
    %1584 = vrot.lane.b32.xlu0 %v1575, 64
    %v1585 = vpop.permute.xlu0 %1584
    %v1587 = vmul.f32 %v1583, %v1585
    %1589 = vrot.lane.b32.xlu0 %v1587, 64
    %v1590 = vpop.permute.xlu0 %1589
    %v1592 = vadd.f32 %v122, %v1590
    %v1593 = vtanh.pop %v1592
    %v1594 = vsub.f32 1.0, %v1583
    %1596 = vrot.lane.b32.xlu0 %v1593, 96
    %v1597 = vpop.permute.xlu0 %1596
    %v1599 = vmul.f32 %v1594, %v1597
    %v1600 = vrot.slane %v1326, 7
    %v1602 = vmul.f32 %v1583, %v1600
    %v1603 = vadd.f32 %v1599, %v1602
    %v1605 = vrot.slane %v1603, 5
    %1606 = vrot.lane.b32.xlu0 %v1605, 96
    %v1607 = vpop.permute.xlu0 %1606
    %v1608 = vsel %vm125, %v1607, 0
    %1610 = vmatprep.subr.mxu0 0.0
    %1611 = vmatpush1.msra.mxu0 0.0
    %1612 = vmatprep.subr.mxu0 0.0
    %1613 = vmatpush1.msra.mxu0 0.0
    %1614 = vmatprep.subr.mxu0 0.0
    %1615 = vmatpush1.msra.mxu0 0.0
    %1616 = vmatprep.subr.mxu0 0.0
    %1617 = vmatpush1.msra.mxu0 0.0
    %1618 = vmatprep.subr.mxu0 0.0
    %1619 = vmatpush1.msra.mxu0 0.0
    %1620 = vmatprep.subr.mxu0 0.0
    %1621 = vmatpush1.msra.mxu0 0.0
    %1622 = vmatprep.subr.mxu0 0.0
    %1623 = vmatpush1.msra.mxu0 0.0
    %1624 = vmatprep.subr.mxu0 0.0
    %1625 = vmatpush1.msra.mxu0 0.0
    %1626 = vmatprep.subr.mxu0 0.0
    %1627 = vmatpush1.msra.mxu0 0.0
    %1628 = vmatprep.subr.mxu0 0.0
    %1629 = vmatpush1.msra.mxu0 0.0
    %1630 = vmatprep.subr.mxu0 0.0
    %1631 = vmatpush1.msra.mxu0 0.0
    %1632 = vmatprep.subr.mxu0 0.0
    %1633 = vmatpush1.msra.mxu0 0.0
    %1634 = vmatprep.subr.mxu0 0.0
    %1635 = vmatpush1.msra.mxu0 %v35
    %1636 = vmatprep.subr.mxu0 0.0
    %1637 = vmatpush1.msra.mxu0 %v34
    %1638 = vmatprep.subr.mxu0 0.0
    %1639 = vmatpush1.msra.mxu0 %v33
    %1640 = vmatprep.subr.mxu0 0.0
    %1641 = vmatpush1.msra.mxu0 %v32
    %1642 = vmatprep.subr.mxu0 0.0
    %1643 = vmatpush2.msra.mxu0 0.0
    %1644 = vmatprep.subr.mxu0 0.0
    %1645 = vmatpush2.msra.mxu0 0.0
    %1646 = vmatprep.subr.mxu0 0.0
    %1647 = vmatpush2.msra.mxu0 0.0
    %1648 = vmatprep.subr.mxu0 0.0
    %1649 = vmatpush2.msra.mxu0 0.0
    %1650 = vmatprep.subr.mxu0 0.0
    %1651 = vmatpush2.msra.mxu0 0.0
    %1652 = vmatprep.subr.mxu0 0.0
    %1653 = vmatpush2.msra.mxu0 0.0
    %1654 = vmatprep.subr.mxu0 0.0
    %1655 = vmatpush2.msra.mxu0 0.0
    %1656 = vmatprep.subr.mxu0 0.0
    %1657 = vmatpush2.msra.mxu0 0.0
    %1658 = vmatprep.subr.mxu0 0.0
    %1659 = vmatpush2.msra.mxu0 0.0
    %1660 = vmatprep.subr.mxu0 0.0
    %1661 = vmatpush2.msra.mxu0 0.0
    %1662 = vmatprep.subr.mxu0 0.0
    %1663 = vmatpush2.msra.mxu0 0.0
    %1664 = vmatprep.subr.mxu0 0.0
    %1665 = vmatpush2.msra.mxu0 0.0
    %1666 = vmatprep.subr.mxu0 0.0
    %1667 = vmatpush2.msra.mxu0 0.0
    %1668 = vmatprep.subr.mxu0 0.0
    %1669 = vmatpush2.msra.mxu0 0.0
    %1670 = vmatprep.subr.mxu0 0.0
    %1671 = vmatpush2.msra.mxu0 0.0
    %1672 = vmatprep.subr.mxu0 0.0
    %1673 = vmatpush2.msra.mxu0 0.0
    %1674 = vmatprep.mubr.f32.mxu0 0.0
    %1675 = vmatmul.mubr.f32.gmra.mxu0 %v1608
    %v1676 = vpop.f32.mrf.mxu0
    %v1677 = vadd.f32 %v36, %v1676
    %v1678 = vpop.f32.mrf.mxu0
    %1679 = vdwg.mxu0
    %1681 = vrot.lane.b32.xlu0 %v1503, 96
    %v1682 = vpop.permute.xlu0 %1681
    %v1683 = vsel %vm125, %v1682, 0
    %1685 = vmatprep.subr.mxu0 0.0
    %1686 = vmatpush1.msra.mxu0 0.0
    %1687 = vmatprep.subr.mxu0 0.0
    %1688 = vmatpush1.msra.mxu0 0.0
    %1689 = vmatprep.subr.mxu0 0.0
    %1690 = vmatpush1.msra.mxu0 0.0
    %1691 = vmatprep.subr.mxu0 0.0
    %1692 = vmatpush1.msra.mxu0 0.0
    %1693 = vmatprep.subr.mxu0 0.0
    %1694 = vmatpush1.msra.mxu0 0.0
    %1695 = vmatprep.subr.mxu0 0.0
    %1696 = vmatpush1.msra.mxu0 0.0
    %1697 = vmatprep.subr.mxu0 0.0
    %1698 = vmatpush1.msra.mxu0 0.0
    %1699 = vmatprep.subr.mxu0 0.0
    %1700 = vmatpush1.msra.mxu0 0.0
    %1701 = vmatprep.subr.mxu0 0.0
    %1702 = vmatpush1.msra.mxu0 0.0
    %1703 = vmatprep.subr.mxu0 0.0
    %1704 = vmatpush1.msra.mxu0 0.0
    %1705 = vmatprep.subr.mxu0 0.0
    %1706 = vmatpush1.msra.mxu0 0.0
    %1707 = vmatprep.subr.mxu0 0.0
    %1708 = vmatpush1.msra.mxu0 0.0
    %1709 = vmatprep.subr.mxu0 0.0
    %1710 = vmatpush1.msra.mxu0 %v40
    %1711 = vmatprep.subr.mxu0 0.0
    %1712 = vmatpush1.msra.mxu0 %v39
    %1713 = vmatprep.subr.mxu0 0.0
    %1714 = vmatpush1.msra.mxu0 %v38
    %1715 = vmatprep.subr.mxu0 0.0
    %1716 = vmatpush1.msra.mxu0 %v37
    %1717 = vmatprep.subr.mxu0 0.0
    %1718 = vmatpush2.msra.mxu0 0.0
    %1719 = vmatprep.subr.mxu0 0.0
    %1720 = vmatpush2.msra.mxu0 0.0
    %1721 = vmatprep.subr.mxu0 0.0
    %1722 = vmatpush2.msra.mxu0 0.0
    %1723 = vmatprep.subr.mxu0 0.0
    %1724 = vmatpush2.msra.mxu0 0.0
    %1725 = vmatprep.subr.mxu0 0.0
    %1726 = vmatpush2.msra.mxu0 0.0
    %1727 = vmatprep.subr.mxu0 0.0
    %1728 = vmatpush2.msra.mxu0 0.0
    %1729 = vmatprep.subr.mxu0 0.0
    %1730 = vmatpush2.msra.mxu0 0.0
    %1731 = vmatprep.subr.mxu0 0.0
    %1732 = vmatpush2.msra.mxu0 0.0
    %1733 = vmatprep.subr.mxu0 0.0
    %1734 = vmatpush2.msra.mxu0 0.0
    %1735 = vmatprep.subr.mxu0 0.0
    %1736 = vmatpush2.msra.mxu0 0.0
    %1737 = vmatprep.subr.mxu0 0.0
    %1738 = vmatpush2.msra.mxu0 0.0
    %1739 = vmatprep.subr.mxu0 0.0
    %1740 = vmatpush2.msra.mxu0 0.0
    %1741 = vmatprep.subr.mxu0 0.0
    %1742 = vmatpush2.msra.mxu0 0.0
    %1743 = vmatprep.subr.mxu0 0.0
    %1744 = vmatpush2.msra.mxu0 0.0
    %1745 = vmatprep.subr.mxu0 0.0
    %1746 = vmatpush2.msra.mxu0 0.0
    %1747 = vmatprep.subr.mxu0 0.0
    %1748 = vmatpush2.msra.mxu0 0.0
    %1749 = vmatprep.mubr.f32.mxu0 0.0
    %1750 = vmatmul.mubr.f32.gmra.mxu0 %v1683
    %v1751 = vpop.f32.mrf.mxu0
    %v1752 = vadd.f32 %v41, %v1751
    %v1753 = vpop.f32.mrf.mxu0
    %1754 = vdwg.mxu0
    %v1755 = vadd.f32 %v1677, %v1752
    %v1756 = vxor.u32 %v1755, 2147483648
    %v1757 = vmul.f32 %v1756, 1.442695
    %v1758 = vpow.pop %v1757
    %v1759 = vadd.f32 %v1758, 1.0
    %v1760 = vrcp.pop %v1759
    %v1761 = vmul.f32 1.0, %v1760
    %1763 = vrot.lane.b32.xlu0 %v1752, 64
    %v1764 = vpop.permute.xlu0 %1763
    %v1766 = vmul.f32 %v1761, %v1764
    %1768 = vrot.lane.b32.xlu0 %v1766, 64
    %v1769 = vpop.permute.xlu0 %1768
    %v1771 = vadd.f32 %v1677, %v1769
    %v1772 = vtanh.pop %v1771
    %v1773 = vsub.f32 1.0, %v1761
    %1775 = vrot.lane.b32.xlu0 %v1772, 96
    %v1776 = vpop.permute.xlu0 %1775
    %v1778 = vmul.f32 %v1773, %v1776
    %v1779 = vmul.f32 %v1761, %v1503
    %v1780 = vadd.f32 %v1778, %v1779
    %1781 = vmatprep.subr.mxu0 0.0
    %1782 = vmatpush1.msra.mxu0 0.0
    %1783 = vmatprep.subr.mxu0 0.0
    %1784 = vmatpush1.msra.mxu0 0.0
    %1785 = vmatprep.subr.mxu0 0.0
    %1786 = vmatpush1.msra.mxu0 0.0
    %1787 = vmatprep.subr.mxu0 0.0
    %1788 = vmatpush1.msra.mxu0 0.0
    %1789 = vmatprep.subr.mxu0 0.0
    %1790 = vmatpush1.msra.mxu0 0.0
    %1791 = vmatprep.subr.mxu0 0.0
    %1792 = vmatpush1.msra.mxu0 0.0
    %1793 = vmatprep.subr.mxu0 0.0
    %1794 = vmatpush1.msra.mxu0 0.0
    %1795 = vmatprep.subr.mxu0 0.0
    %1796 = vmatpush1.msra.mxu0 0.0
    %1797 = vmatprep.subr.mxu0 0.0
    %1798 = vmatpush1.msra.mxu0 0.0
    %1799 = vmatprep.subr.mxu0 0.0
    %1800 = vmatpush1.msra.mxu0 0.0
    %1801 = vmatprep.subr.mxu0 0.0
    %1802 = vmatpush1.msra.mxu0 0.0
    %1803 = vmatprep.subr.mxu0 0.0
    %1804 = vmatpush1.msra.mxu0 0.0
    %1805 = vmatprep.subr.mxu0 0.0
    %1806 = vmatpush1.msra.mxu0 %v30
    %1807 = vmatprep.subr.mxu0 0.0
    %1808 = vmatpush1.msra.mxu0 %v29
    %1809 = vmatprep.subr.mxu0 0.0
    %1810 = vmatpush1.msra.mxu0 %v28
    %1811 = vmatprep.subr.mxu0 0.0
    %1812 = vmatpush1.msra.mxu0 %v27
    %1813 = vmatprep.subr.mxu0 0.0
    %1814 = vmatpush2.msra.mxu0 0.0
    %1815 = vmatprep.subr.mxu0 0.0
    %1816 = vmatpush2.msra.mxu0 0.0
    %1817 = vmatprep.subr.mxu0 0.0
    %1818 = vmatpush2.msra.mxu0 0.0
    %1819 = vmatprep.subr.mxu0 0.0
    %1820 = vmatpush2.msra.mxu0 0.0
    %1821 = vmatprep.subr.mxu0 0.0
    %1822 = vmatpush2.msra.mxu0 0.0
    %1823 = vmatprep.subr.mxu0 0.0
    %1824 = vmatpush2.msra.mxu0 0.0
    %1825 = vmatprep.subr.mxu0 0.0
    %1826 = vmatpush2.msra.mxu0 0.0
    %1827 = vmatprep.subr.mxu0 0.0
    %1828 = vmatpush2.msra.mxu0 0.0
    %1829 = vmatprep.subr.mxu0 0.0
    %1830 = vmatpush2.msra.mxu0 0.0
    %1831 = vmatprep.subr.mxu0 0.0
    %1832 = vmatpush2.msra.mxu0 0.0
    %1833 = vmatprep.subr.mxu0 0.0
    %1834 = vmatpush2.msra.mxu0 0.0
    %1835 = vmatprep.subr.mxu0 0.0
    %1836 = vmatpush2.msra.mxu0 0.0
    %1837 = vmatprep.subr.mxu0 0.0
    %1838 = vmatpush2.msra.mxu0 0.0
    %1839 = vmatprep.subr.mxu0 0.0
    %1840 = vmatpush2.msra.mxu0 0.0
    %1841 = vmatprep.subr.mxu0 0.0
    %1842 = vmatpush2.msra.mxu0 0.0
    %1843 = vmatprep.subr.mxu0 0.0
    %1844 = vmatpush2.msra.mxu0 0.0
    %1845 = vmatprep.mubr.f32.mxu0 0.0
    %1846 = vmatmul.mubr.f32.gmra.mxu0 %v1608
    %v1847 = vpop.f32.mrf.mxu0
    %v1848 = vadd.f32 %v31, %v1847
    %v1849 = vpop.f32.mrf.mxu0
    %1850 = vdwg.mxu0
    %v1852 = vrot.slane %v1848, 2
    %v1854 = vadd.f32 %v122, %v1852
    %v1855 = vxor.u32 %v1854, 2147483648
    %v1856 = vmul.f32 %v1855, 1.442695
    %v1857 = vpow.pop %v1856
    %v1858 = vadd.f32 %v1857, 1.0
    %v1859 = vrcp.pop %v1858
    %v1860 = vmul.f32 1.0, %v1859
    %1861 = vrot.lane.b32.xlu0 %v1852, 64
    %v1862 = vpop.permute.xlu0 %1861
    %v1864 = vmul.f32 %v1860, %v1862
    %1866 = vrot.lane.b32.xlu0 %v1864, 64
    %v1867 = vpop.permute.xlu0 %1866
    %v1869 = vadd.f32 %v122, %v1867
    %v1870 = vtanh.pop %v1869
    %v1871 = vsub.f32 1.0, %v1860
    %1873 = vrot.lane.b32.xlu0 %v1870, 96
    %v1874 = vpop.permute.xlu0 %1873
    %v1876 = vmul.f32 %v1871, %v1874
    %v1877 = vrot.slane %v1603, 7
    %v1879 = vmul.f32 %v1860, %v1877
    %v1880 = vadd.f32 %v1876, %v1879
    %v1882 = vrot.slane %v1880, 6
    %1883 = vrot.lane.b32.xlu0 %v1882, 96
    %v1884 = vpop.permute.xlu0 %1883
    %v1885 = vsel %vm125, %v1884, 0
    %1887 = vmatprep.subr.mxu0 0.0
    %1888 = vmatpush1.msra.mxu0 0.0
    %1889 = vmatprep.subr.mxu0 0.0
    %1890 = vmatpush1.msra.mxu0 0.0
    %1891 = vmatprep.subr.mxu0 0.0
    %1892 = vmatpush1.msra.mxu0 0.0
    %1893 = vmatprep.subr.mxu0 0.0
    %1894 = vmatpush1.msra.mxu0 0.0
    %1895 = vmatprep.subr.mxu0 0.0
    %1896 = vmatpush1.msra.mxu0 0.0
    %1897 = vmatprep.subr.mxu0 0.0
    %1898 = vmatpush1.msra.mxu0 0.0
    %1899 = vmatprep.subr.mxu0 0.0
    %1900 = vmatpush1.msra.mxu0 0.0
    %1901 = vmatprep.subr.mxu0 0.0
    %1902 = vmatpush1.msra.mxu0 0.0
    %1903 = vmatprep.subr.mxu0 0.0
    %1904 = vmatpush1.msra.mxu0 0.0
    %1905 = vmatprep.subr.mxu0 0.0
    %1906 = vmatpush1.msra.mxu0 0.0
    %1907 = vmatprep.subr.mxu0 0.0
    %1908 = vmatpush1.msra.mxu0 0.0
    %1909 = vmatprep.subr.mxu0 0.0
    %1910 = vmatpush1.msra.mxu0 0.0
    %1911 = vmatprep.subr.mxu0 0.0
    %1912 = vmatpush1.msra.mxu0 %v35
    %1913 = vmatprep.subr.mxu0 0.0
    %1914 = vmatpush1.msra.mxu0 %v34
    %1915 = vmatprep.subr.mxu0 0.0
    %1916 = vmatpush1.msra.mxu0 %v33
    %1917 = vmatprep.subr.mxu0 0.0
    %1918 = vmatpush1.msra.mxu0 %v32
    %1919 = vmatprep.subr.mxu0 0.0
    %1920 = vmatpush2.msra.mxu0 0.0
    %1921 = vmatprep.subr.mxu0 0.0
    %1922 = vmatpush2.msra.mxu0 0.0
    %1923 = vmatprep.subr.mxu0 0.0
    %1924 = vmatpush2.msra.mxu0 0.0
    %1925 = vmatprep.subr.mxu0 0.0
    %1926 = vmatpush2.msra.mxu0 0.0
    %1927 = vmatprep.subr.mxu0 0.0
    %1928 = vmatpush2.msra.mxu0 0.0
    %1929 = vmatprep.subr.mxu0 0.0
    %1930 = vmatpush2.msra.mxu0 0.0
    %1931 = vmatprep.subr.mxu0 0.0
    %1932 = vmatpush2.msra.mxu0 0.0
    %1933 = vmatprep.subr.mxu0 0.0
    %1934 = vmatpush2.msra.mxu0 0.0
    %1935 = vmatprep.subr.mxu0 0.0
    %1936 = vmatpush2.msra.mxu0 0.0
    %1937 = vmatprep.subr.mxu0 0.0
    %1938 = vmatpush2.msra.mxu0 0.0
    %1939 = vmatprep.subr.mxu0 0.0
    %1940 = vmatpush2.msra.mxu0 0.0
    %1941 = vmatprep.subr.mxu0 0.0
    %1942 = vmatpush2.msra.mxu0 0.0
    %1943 = vmatprep.subr.mxu0 0.0
    %1944 = vmatpush2.msra.mxu0 0.0
    %1945 = vmatprep.subr.mxu0 0.0
    %1946 = vmatpush2.msra.mxu0 0.0
    %1947 = vmatprep.subr.mxu0 0.0
    %1948 = vmatpush2.msra.mxu0 0.0
    %1949 = vmatprep.subr.mxu0 0.0
    %1950 = vmatpush2.msra.mxu0 0.0
    %1951 = vmatprep.mubr.f32.mxu0 0.0
    %1952 = vmatmul.mubr.f32.gmra.mxu0 %v1885
    %v1953 = vpop.f32.mrf.mxu0
    %v1954 = vadd.f32 %v36, %v1953
    %v1955 = vpop.f32.mrf.mxu0
    %1956 = vdwg.mxu0
    %1958 = vrot.lane.b32.xlu0 %v1780, 96
    %v1959 = vpop.permute.xlu0 %1958
    %v1960 = vsel %vm125, %v1959, 0
    %1962 = vmatprep.subr.mxu0 0.0
    %1963 = vmatpush1.msra.mxu0 0.0
    %1964 = vmatprep.subr.mxu0 0.0
    %1965 = vmatpush1.msra.mxu0 0.0
    %1966 = vmatprep.subr.mxu0 0.0
    %1967 = vmatpush1.msra.mxu0 0.0
    %1968 = vmatprep.subr.mxu0 0.0
    %1969 = vmatpush1.msra.mxu0 0.0
    %1970 = vmatprep.subr.mxu0 0.0
    %1971 = vmatpush1.msra.mxu0 0.0
    %1972 = vmatprep.subr.mxu0 0.0
    %1973 = vmatpush1.msra.mxu0 0.0
    %1974 = vmatprep.subr.mxu0 0.0
    %1975 = vmatpush1.msra.mxu0 0.0
    %1976 = vmatprep.subr.mxu0 0.0
    %1977 = vmatpush1.msra.mxu0 0.0
    %1978 = vmatprep.subr.mxu0 0.0
    %1979 = vmatpush1.msra.mxu0 0.0
    %1980 = vmatprep.subr.mxu0 0.0
    %1981 = vmatpush1.msra.mxu0 0.0
    %1982 = vmatprep.subr.mxu0 0.0
    %1983 = vmatpush1.msra.mxu0 0.0
    %1984 = vmatprep.subr.mxu0 0.0
    %1985 = vmatpush1.msra.mxu0 0.0
    %1986 = vmatprep.subr.mxu0 0.0
    %1987 = vmatpush1.msra.mxu0 %v40
    %1988 = vmatprep.subr.mxu0 0.0
    %1989 = vmatpush1.msra.mxu0 %v39
    %1990 = vmatprep.subr.mxu0 0.0
    %1991 = vmatpush1.msra.mxu0 %v38
    %1992 = vmatprep.subr.mxu0 0.0
    %1993 = vmatpush1.msra.mxu0 %v37
    %1994 = vmatprep.subr.mxu0 0.0
    %1995 = vmatpush2.msra.mxu0 0.0
    %1996 = vmatprep.subr.mxu0 0.0
    %1997 = vmatpush2.msra.mxu0 0.0
    %1998 = vmatprep.subr.mxu0 0.0
    %1999 = vmatpush2.msra.mxu0 0.0
    %2000 = vmatprep.subr.mxu0 0.0
    %2001 = vmatpush2.msra.mxu0 0.0
    %2002 = vmatprep.subr.mxu0 0.0
    %2003 = vmatpush2.msra.mxu0 0.0
    %2004 = vmatprep.subr.mxu0 0.0
    %2005 = vmatpush2.msra.mxu0 0.0
    %2006 = vmatprep.subr.mxu0 0.0
    %2007 = vmatpush2.msra.mxu0 0.0
    %2008 = vmatprep.subr.mxu0 0.0
    %2009 = vmatpush2.msra.mxu0 0.0
    %2010 = vmatprep.subr.mxu0 0.0
    %2011 = vmatpush2.msra.mxu0 0.0
    %2012 = vmatprep.subr.mxu0 0.0
    %2013 = vmatpush2.msra.mxu0 0.0
    %2014 = vmatprep.subr.mxu0 0.0
    %2015 = vmatpush2.msra.mxu0 0.0
    %2016 = vmatprep.subr.mxu0 0.0
    %2017 = vmatpush2.msra.mxu0 0.0
    %2018 = vmatprep.subr.mxu0 0.0
    %2019 = vmatpush2.msra.mxu0 0.0
    %2020 = vmatprep.subr.mxu0 0.0
    %2021 = vmatpush2.msra.mxu0 0.0
    %2022 = vmatprep.subr.mxu0 0.0
    %2023 = vmatpush2.msra.mxu0 0.0
    %2024 = vmatprep.subr.mxu0 0.0
    %2025 = vmatpush2.msra.mxu0 0.0
    %2026 = vmatprep.mubr.f32.mxu0 0.0
    %2027 = vmatmul.mubr.f32.gmra.mxu0 %v1960
    %v2028 = vpop.f32.mrf.mxu0
    %v2029 = vadd.f32 %v41, %v2028
    %v2030 = vpop.f32.mrf.mxu0
    %2031 = vdwg.mxu0
    %v2032 = vadd.f32 %v1954, %v2029
    %v2033 = vxor.u32 %v2032, 2147483648
    %v2034 = vmul.f32 %v2033, 1.442695
    %v2035 = vpow.pop %v2034
    %v2036 = vadd.f32 %v2035, 1.0
    %v2037 = vrcp.pop %v2036
    %v2038 = vmul.f32 1.0, %v2037
    %2040 = vrot.lane.b32.xlu0 %v2029, 64
    %v2041 = vpop.permute.xlu0 %2040
    %v2043 = vmul.f32 %v2038, %v2041
    %2045 = vrot.lane.b32.xlu0 %v2043, 64
    %v2046 = vpop.permute.xlu0 %2045
    %v2048 = vadd.f32 %v1954, %v2046
    %v2049 = vtanh.pop %v2048
    %v2050 = vsub.f32 1.0, %v2038
    %2052 = vrot.lane.b32.xlu0 %v2049, 96
    %v2053 = vpop.permute.xlu0 %2052
    %v2055 = vmul.f32 %v2050, %v2053
    %v2056 = vmul.f32 %v2038, %v1780
    %v2057 = vadd.f32 %v2055, %v2056
    %2058 = vmatprep.subr.mxu0 0.0
    %2059 = vmatpush1.msra.mxu0 0.0
    %2060 = vmatprep.subr.mxu0 0.0
    %2061 = vmatpush1.msra.mxu0 0.0
    %2062 = vmatprep.subr.mxu0 0.0
    %2063 = vmatpush1.msra.mxu0 0.0
    %2064 = vmatprep.subr.mxu0 0.0
    %2065 = vmatpush1.msra.mxu0 0.0
    %2066 = vmatprep.subr.mxu0 0.0
    %2067 = vmatpush1.msra.mxu0 0.0
    %2068 = vmatprep.subr.mxu0 0.0
    %2069 = vmatpush1.msra.mxu0 0.0
    %2070 = vmatprep.subr.mxu0 0.0
    %2071 = vmatpush1.msra.mxu0 0.0
    %2072 = vmatprep.subr.mxu0 0.0
    %2073 = vmatpush1.msra.mxu0 0.0
    %2074 = vmatprep.subr.mxu0 0.0
    %2075 = vmatpush1.msra.mxu0 0.0
    %2076 = vmatprep.subr.mxu0 0.0
    %2077 = vmatpush1.msra.mxu0 0.0
    %2078 = vmatprep.subr.mxu0 0.0
    %2079 = vmatpush1.msra.mxu0 0.0
    %2080 = vmatprep.subr.mxu0 0.0
    %2081 = vmatpush1.msra.mxu0 0.0
    %2082 = vmatprep.subr.mxu0 0.0
    %2083 = vmatpush1.msra.mxu0 %v30
    %2084 = vmatprep.subr.mxu0 0.0
    %2085 = vmatpush1.msra.mxu0 %v29
    %2086 = vmatprep.subr.mxu0 0.0
    %2087 = vmatpush1.msra.mxu0 %v28
    %2088 = vmatprep.subr.mxu0 0.0
    %2089 = vmatpush1.msra.mxu0 %v27
    %2090 = vmatprep.subr.mxu0 0.0
    %2091 = vmatpush2.msra.mxu0 0.0
    %2092 = vmatprep.subr.mxu0 0.0
    %2093 = vmatpush2.msra.mxu0 0.0
    %2094 = vmatprep.subr.mxu0 0.0
    %2095 = vmatpush2.msra.mxu0 0.0
    %2096 = vmatprep.subr.mxu0 0.0
    %2097 = vmatpush2.msra.mxu0 0.0
    %2098 = vmatprep.subr.mxu0 0.0
    %2099 = vmatpush2.msra.mxu0 0.0
    %2100 = vmatprep.subr.mxu0 0.0
    %2101 = vmatpush2.msra.mxu0 0.0
    %2102 = vmatprep.subr.mxu0 0.0
    %2103 = vmatpush2.msra.mxu0 0.0
    %2104 = vmatprep.subr.mxu0 0.0
    %2105 = vmatpush2.msra.mxu0 0.0
    %2106 = vmatprep.subr.mxu0 0.0
    %2107 = vmatpush2.msra.mxu0 0.0
    %2108 = vmatprep.subr.mxu0 0.0
    %2109 = vmatpush2.msra.mxu0 0.0
    %2110 = vmatprep.subr.mxu0 0.0
    %2111 = vmatpush2.msra.mxu0 0.0
    %2112 = vmatprep.subr.mxu0 0.0
    %2113 = vmatpush2.msra.mxu0 0.0
    %2114 = vmatprep.subr.mxu0 0.0
    %2115 = vmatpush2.msra.mxu0 0.0
    %2116 = vmatprep.subr.mxu0 0.0
    %2117 = vmatpush2.msra.mxu0 0.0
    %2118 = vmatprep.subr.mxu0 0.0
    %2119 = vmatpush2.msra.mxu0 0.0
    %2120 = vmatprep.subr.mxu0 0.0
    %2121 = vmatpush2.msra.mxu0 0.0
    %2122 = vmatprep.mubr.f32.mxu0 0.0
    %2123 = vmatmul.mubr.f32.gmra.mxu0 %v1885
    %v2124 = vpop.f32.mrf.mxu0
    %v2125 = vadd.f32 %v31, %v2124
    %v2126 = vpop.f32.mrf.mxu0
    %2127 = vdwg.mxu0
    %v2129 = vrot.slane %v2125, 1
    %v2131 = vadd.f32 %v122, %v2129
    %v2132 = vxor.u32 %v2131, 2147483648
    %v2133 = vmul.f32 %v2132, 1.442695
    %v2134 = vpow.pop %v2133
    %v2135 = vadd.f32 %v2134, 1.0
    %v2136 = vrcp.pop %v2135
    %v2137 = vmul.f32 1.0, %v2136
    %2138 = vrot.lane.b32.xlu0 %v2129, 64
    %v2139 = vpop.permute.xlu0 %2138
    %v2141 = vmul.f32 %v2137, %v2139
    %2143 = vrot.lane.b32.xlu0 %v2141, 64
    %v2144 = vpop.permute.xlu0 %2143
    %v2146 = vadd.f32 %v122, %v2144
    %v2147 = vtanh.pop %v2146
    %v2148 = vsub.f32 1.0, %v2137
    %2150 = vrot.lane.b32.xlu0 %v2147, 96
    %v2151 = vpop.permute.xlu0 %2150
    %v2153 = vmul.f32 %v2148, %v2151
    %v2154 = vrot.slane %v1880, 7
    %v2156 = vmul.f32 %v2137, %v2154
    %v2157 = vadd.f32 %v2153, %v2156
    %v2159 = vrot.slane %v2157, 7
    %2160 = vrot.lane.b32.xlu0 %v2159, 96
    %v2161 = vpop.permute.xlu0 %2160
    %v2162 = vsel %vm125, %v2161, 0
    %2164 = vmatprep.subr.mxu0 0.0
    %2165 = vmatpush1.msra.mxu0 0.0
    %2166 = vmatprep.subr.mxu0 0.0
    %2167 = vmatpush1.msra.mxu0 0.0
    %2168 = vmatprep.subr.mxu0 0.0
    %2169 = vmatpush1.msra.mxu0 0.0
    %2170 = vmatprep.subr.mxu0 0.0
    %2171 = vmatpush1.msra.mxu0 0.0
    %2172 = vmatprep.subr.mxu0 0.0
    %2173 = vmatpush1.msra.mxu0 0.0
    %2174 = vmatprep.subr.mxu0 0.0
    %2175 = vmatpush1.msra.mxu0 0.0
    %2176 = vmatprep.subr.mxu0 0.0
    %2177 = vmatpush1.msra.mxu0 0.0
    %2178 = vmatprep.subr.mxu0 0.0
    %2179 = vmatpush1.msra.mxu0 0.0
    %2180 = vmatprep.subr.mxu0 0.0
    %2181 = vmatpush1.msra.mxu0 0.0
    %2182 = vmatprep.subr.mxu0 0.0
    %2183 = vmatpush1.msra.mxu0 0.0
    %2184 = vmatprep.subr.mxu0 0.0
    %2185 = vmatpush1.msra.mxu0 0.0
    %2186 = vmatprep.subr.mxu0 0.0
    %2187 = vmatpush1.msra.mxu0 0.0
    %2188 = vmatprep.subr.mxu0 0.0
    %2189 = vmatpush1.msra.mxu0 %v35
    %2190 = vmatprep.subr.mxu0 0.0
    %2191 = vmatpush1.msra.mxu0 %v34
    %2192 = vmatprep.subr.mxu0 0.0
    %2193 = vmatpush1.msra.mxu0 %v33
    %2194 = vmatprep.subr.mxu0 0.0
    %2195 = vmatpush1.msra.mxu0 %v32
    %2196 = vmatprep.subr.mxu0 0.0
    %2197 = vmatpush2.msra.mxu0 0.0
    %2198 = vmatprep.subr.mxu0 0.0
    %2199 = vmatpush2.msra.mxu0 0.0
    %2200 = vmatprep.subr.mxu0 0.0
    %2201 = vmatpush2.msra.mxu0 0.0
    %2202 = vmatprep.subr.mxu0 0.0
    %2203 = vmatpush2.msra.mxu0 0.0
    %2204 = vmatprep.subr.mxu0 0.0
    %2205 = vmatpush2.msra.mxu0 0.0
    %2206 = vmatprep.subr.mxu0 0.0
    %2207 = vmatpush2.msra.mxu0 0.0
    %2208 = vmatprep.subr.mxu0 0.0
    %2209 = vmatpush2.msra.mxu0 0.0
    %2210 = vmatprep.subr.mxu0 0.0
    %2211 = vmatpush2.msra.mxu0 0.0
    %2212 = vmatprep.subr.mxu0 0.0
    %2213 = vmatpush2.msra.mxu0 0.0
    %2214 = vmatprep.subr.mxu0 0.0
    %2215 = vmatpush2.msra.mxu0 0.0
    %2216 = vmatprep.subr.mxu0 0.0
    %2217 = vmatpush2.msra.mxu0 0.0
    %2218 = vmatprep.subr.mxu0 0.0
    %2219 = vmatpush2.msra.mxu0 0.0
    %2220 = vmatprep.subr.mxu0 0.0
    %2221 = vmatpush2.msra.mxu0 0.0
    %2222 = vmatprep.subr.mxu0 0.0
    %2223 = vmatpush2.msra.mxu0 0.0
    %2224 = vmatprep.subr.mxu0 0.0
    %2225 = vmatpush2.msra.mxu0 0.0
    %2226 = vmatprep.subr.mxu0 0.0
    %2227 = vmatpush2.msra.mxu0 0.0
    %2228 = vmatprep.mubr.f32.mxu0 0.0
    %2229 = vmatmul.mubr.f32.gmra.mxu0 %v2162
    %v2230 = vpop.f32.mrf.mxu0
    %v2231 = vadd.f32 %v36, %v2230
    %v2232 = vpop.f32.mrf.mxu0
    %2233 = vdwg.mxu0
    %2235 = vrot.lane.b32.xlu0 %v2057, 96
    %v2236 = vpop.permute.xlu0 %2235
    %v2237 = vsel %vm125, %v2236, 0
    %2239 = vmatprep.subr.mxu0 0.0
    %2240 = vmatpush1.msra.mxu0 0.0
    %2241 = vmatprep.subr.mxu0 0.0
    %2242 = vmatpush1.msra.mxu0 0.0
    %2243 = vmatprep.subr.mxu0 0.0
    %2244 = vmatpush1.msra.mxu0 0.0
    %2245 = vmatprep.subr.mxu0 0.0
    %2246 = vmatpush1.msra.mxu0 0.0
    %2247 = vmatprep.subr.mxu0 0.0
    %2248 = vmatpush1.msra.mxu0 0.0
    %2249 = vmatprep.subr.mxu0 0.0
    %2250 = vmatpush1.msra.mxu0 0.0
    %2251 = vmatprep.subr.mxu0 0.0
    %2252 = vmatpush1.msra.mxu0 0.0
    %2253 = vmatprep.subr.mxu0 0.0
    %2254 = vmatpush1.msra.mxu0 0.0
    %2255 = vmatprep.subr.mxu0 0.0
    %2256 = vmatpush1.msra.mxu0 0.0
    %2257 = vmatprep.subr.mxu0 0.0
    %2258 = vmatpush1.msra.mxu0 0.0
    %2259 = vmatprep.subr.mxu0 0.0
    %2260 = vmatpush1.msra.mxu0 0.0
    %2261 = vmatprep.subr.mxu0 0.0
    %2262 = vmatpush1.msra.mxu0 0.0
    %2263 = vmatprep.subr.mxu0 0.0
    %2264 = vmatpush1.msra.mxu0 %v40
    %2265 = vmatprep.subr.mxu0 0.0
    %2266 = vmatpush1.msra.mxu0 %v39
    %2267 = vmatprep.subr.mxu0 0.0
    %2268 = vmatpush1.msra.mxu0 %v38
    %2269 = vmatprep.subr.mxu0 0.0
    %2270 = vmatpush1.msra.mxu0 %v37
    %2271 = vmatprep.subr.mxu0 0.0
    %2272 = vmatpush2.msra.mxu0 0.0
    %2273 = vmatprep.subr.mxu0 0.0
    %2274 = vmatpush2.msra.mxu0 0.0
    %2275 = vmatprep.subr.mxu0 0.0
    %2276 = vmatpush2.msra.mxu0 0.0
    %2277 = vmatprep.subr.mxu0 0.0
    %2278 = vmatpush2.msra.mxu0 0.0
    %2279 = vmatprep.subr.mxu0 0.0
    %2280 = vmatpush2.msra.mxu0 0.0
    %2281 = vmatprep.subr.mxu0 0.0
    %2282 = vmatpush2.msra.mxu0 0.0
    %2283 = vmatprep.subr.mxu0 0.0
    %2284 = vmatpush2.msra.mxu0 0.0
    %2285 = vmatprep.subr.mxu0 0.0
    %2286 = vmatpush2.msra.mxu0 0.0
    %2287 = vmatprep.subr.mxu0 0.0
    %2288 = vmatpush2.msra.mxu0 0.0
    %2289 = vmatprep.subr.mxu0 0.0
    %2290 = vmatpush2.msra.mxu0 0.0
    %2291 = vmatprep.subr.mxu0 0.0
    %2292 = vmatpush2.msra.mxu0 0.0
    %2293 = vmatprep.subr.mxu0 0.0
    %2294 = vmatpush2.msra.mxu0 0.0
    %2295 = vmatprep.subr.mxu0 0.0
    %2296 = vmatpush2.msra.mxu0 0.0
    %2297 = vmatprep.subr.mxu0 0.0
    %2298 = vmatpush2.msra.mxu0 0.0
    %2299 = vmatprep.subr.mxu0 0.0
    %2300 = vmatpush2.msra.mxu0 0.0
    %2301 = vmatprep.subr.mxu0 0.0
    %2302 = vmatpush2.msra.mxu0 0.0
    %2303 = vmatprep.mubr.f32.mxu0 0.0
    %2304 = vmatmul.mubr.f32.gmra.mxu0 %v2237
    %v2305 = vpop.f32.mrf.mxu0
    %v2306 = vadd.f32 %v41, %v2305
    %v2307 = vpop.f32.mrf.mxu0
    %2308 = vdwg.mxu0
    %v2309 = vadd.f32 %v2231, %v2306
    %v2310 = vxor.u32 %v2309, 2147483648
    %v2311 = vmul.f32 %v2310, 1.442695
    %v2312 = vpow.pop %v2311
    %v2313 = vadd.f32 %v2312, 1.0
    %v2314 = vrcp.pop %v2313
    %v2315 = vmul.f32 1.0, %v2314
    %2317 = vrot.lane.b32.xlu0 %v2306, 64
    %v2318 = vpop.permute.xlu0 %2317
    %v2320 = vmul.f32 %v2315, %v2318
    %2322 = vrot.lane.b32.xlu0 %v2320, 64
    %v2323 = vpop.permute.xlu0 %2322
    %v2325 = vadd.f32 %v2231, %v2323
    %v2326 = vtanh.pop %v2325
    %v2327 = vsub.f32 1.0, %v2315
    %2329 = vrot.lane.b32.xlu0 %v2326, 96
    %v2330 = vpop.permute.xlu0 %2329
    %v2332 = vmul.f32 %v2327, %v2330
    %v2333 = vmul.f32 %v2315, %v2057
    %v2334 = vadd.f32 %v2332, %v2333
    %v2335 = vrot.slane %v672, 7
    %v2337 = vrot.slane %v949, 6
    %v2339 = vrot.slane %v1226, 5
    %v2341 = vrot.slane %v1503, 4
    %v2343 = vrot.slane %v1780, 3
    %v2345 = vrot.slane %v2057, 2
    %v2348 = vrot.slane %v2334, 1
    %vm2350 = vcmask 1040384
    %v2351 = vsel %vm2350, %v395, %v2335
    %vm2352 = vcmask 1041408
    %v2353 = vsel %vm2352, %v2351, %v2337
    %vm2354 = vcmask 1042432
    %v2355 = vsel %vm2354, %v2353, %v2339
    %v2356 = vsel %vm51, %v2355, %v2341
    %vm2357 = vcmask 1044480
    %v2358 = vsel %vm2357, %v2356, %v2343
    %vm2359 = vcmask 1045504
    %v2360 = vsel %vm2359, %v2358, %v2345
    %vm2361 = vcmask 1046528
    %v2362 = vsel %vm2361, %v2360, %v2348
    %v2363 = vmax.f32 %v2362, 0.0
    %v2364 = vld [vmem:[#allocation2 + $0x88] sm:$0x1]
    %v2365 = vld [vmem:[#allocation2 + $0x90] sm:$0x1]
    %v2366 = vlaneseq
    %v2367 = vshrl.u32 %v2366, 7
    %v2368 = vsub.s32 0, %v2367
    %v2369 = vrot.slane %v2364, %v2368
    %2371 = vrot.lane.b32.xlu0 %v2369, 32
    %v2372 = vpop.permute.xlu0 %2371
    %v2374 = vmul.f32 %v2363, %v2372
    %2376 = vrot.lane.b32.xlu0 %v2374, 96
    %v2377 = vpop.permute.xlu0 %2376
    %v2379 = vsel %vm125, %v2377, 0.0
    %2380 = vadd.xlane.f32.xlu0 %v2379
    %v2381 = vpop.xlane.xlu0 %2380
    %v2382 = vlaneseq
    %v2383 = vshrl.u32 %v2382, 7
    %v2384 = vsub.s32 0, %v2383
    %v2385 = vrot.slane %v2365, %v2384
    %v2386 = vadd.f32 %v2381, %v2385
    %vm2387 = vcmask 7168
    %2388 = vst.msk [vmem:[%s2] sm:$0xff] %vm2387, %v2386
    // Predicated region
    $region14: #{tpu_custom_call.1} parent=1 // pred_check
      _
    $region15: #{tpu_custom_call.1} parent=1 // pred_check_branch
      %2390 = sbr.rel (0) target = $region17
    $region16: #{tpu_custom_call.1} parent=1 // pred_region
      _
    $region17: #{tpu_custom_call.1} parent=1 // pred_fallthru
      _
    // Predicated region
    $region18: #{tpu_custom_call.1} parent=1 // pred_check
      _
    $region19: #{tpu_custom_call.1} parent=1 // pred_check_branch
      %2392 = sbr.rel (0) target = $region21
    $region20: #{tpu_custom_call.1} parent=1 // pred_region
      _
    $region21: #{tpu_custom_call.1} parent=1 // pred_fallthru
      _
    %2393 = vsyncpa [#allocation3], 1

</llo_original>
